<compile_context>
chip_gen: v7x
topology: tpu7x:2x2x1
jax: 0.10.0
libtpu: 0.0.40
codegen_flags: <defaults>
</compile_context>

<pallas_src>
import functools

import jax
import jax.numpy as jnp
import numpy as np
from jax.experimental import pallas as pl
from jax.experimental.pallas import tpu as pltpu

LN_EPS = 1e-5
_INV_SQRT2 = 0.7071067811865476


def _layernorm_nobias(x, gamma):
    # PyTorch LayerNorm (biased variance), bias=False; math in f32.
    mean = jnp.mean(x, axis=-1, keepdims=True)
    var = jnp.mean((x - mean) ** 2, axis=-1, keepdims=True)
    return (x - mean) * jax.lax.rsqrt(var + LN_EPS) * gamma


def _gelu_exact(x):
    # torch.nn.GELU() default = exact erf formulation
    return 0.5 * x * (1.0 + jax.lax.erf(x * _INV_SQRT2))


def _vmem_limit_bytes():
    # item 10: per-generation VMEM budget (3/4 of physical, capped at 100 MiB);
    # conservative 64 MiB fallback if the query is unavailable.
    cap = None
    try:
        cap = getattr(pltpu.get_tpu_info(), "vmem_capacity_bytes", None)
    except Exception:
        cap = None
    if not cap:
        return 64 * 1024 * 1024
    return int(min(cap * 3 // 4, 100 * 1024 * 1024))


# ---------------------------------------------------------------------------
# Kernel 1: LayerNorm1 + fused QKV projection     grid = (B, S // tile_s)
# ---------------------------------------------------------------------------
def _ln_qkv_kernel(x_ref, g1_ref, wqkv_ref, bqkv_ref, qkv_ref):
    x = x_ref[0].astype(jnp.float32)                       # (TS, D)
    xn = _layernorm_nobias(x, g1_ref[0].astype(jnp.float32))
    qkv = jnp.dot(xn.astype(wqkv_ref.dtype), wqkv_ref[...],
                  preferred_element_type=jnp.float32)
    qkv = qkv + bqkv_ref[0].astype(jnp.float32)            # (TS, 3D)
    # One wide, lane-dense store (no per-head scatter, no masked vst).
    qkv_ref[0] = qkv.astype(qkv_ref.dtype)


# ---------------------------------------------------------------------------
# Kernel 2: flash attention (triangular schedule) + out-proj + residual
#           grid = (B, n_tri_steps), scalar-prefetched (qi, ki) tables
# ---------------------------------------------------------------------------
def _flash_attn_kernel(qi_ref, ki_ref, x_ref, q_ref, k_ref, v_ref,
                       wo_ref, bo_ref, o_ref, m_sc, l_sc, acc_sc,
                       *, n_heads: int):
    t = pl.program_id(1)
    qi = qi_ref[t]
    ki = ki_ref[t]

    @pl.when(ki == 0)
    def _init():
        m_sc[...] = jnp.full(m_sc.shape, -jnp.inf, jnp.float32)
        l_sc[...] = jnp.zeros(l_sc.shape, jnp.float32)
        acc_sc[...] = jnp.zeros(acc_sc.shape, jnp.float32)

    def split_heads(flat):                                  # (T, D) -> (H, T, dh)
        dh = flat.shape[-1] // n_heads
        # Lane slices + leading-axis stack: pure vreg re-arrangement when
        # d_head is a multiple of 128 (no XLU shuffle, no masked loads).
        return jnp.stack(
            [flat[:, h * dh:(h + 1) * dh] for h in range(n_heads)], axis=0)

    def online_softmax_update(masked):
        q = split_heads(q_ref[0])                           # (H, TQ, dh)
        k = split_heads(k_ref[0])                           # (H, TK, dh)
        v = split_heads(v_ref[0])
        # 1/sqrt(d_head) is pre-folded into the q columns of wqkv/bqkv, so no
        # per-step VPU scale multiply is needed here (item 5).
        s = jnp.einsum("hqd,hkd->hqk", q, k,
                       preferred_element_type=jnp.float32)
        if masked:
            # Diagonal tile only (item 6): qi == ki and TQ == TK, so the mask
            # is the plain lower-triangular local mask.
            tq, tk = s.shape[1], s.shape[2]
            row = jax.lax.broadcasted_iota(jnp.int32, (tq, tk), 0)
            col = jax.lax.broadcasted_iota(jnp.int32, (tq, tk), 1)
            s = jnp.where((row >= col)[None, :, :], s, -jnp.inf)
        m_prev = m_sc[...]                                  # (H, TQ, 1)
        m_new = jnp.maximum(m_prev, jnp.max(s, axis=-1, keepdims=True))
        # TODO(synk): on v6e/v7x these exps could run in bf16 on the EUP.
        alpha = jnp.exp(m_prev - m_new)
        p = jnp.exp(s - m_new)                              # (H, TQ, TK)
        l_sc[...] = alpha * l_sc[...] + jnp.sum(p, axis=-1, keepdims=True)
        acc_sc[...] = alpha * acc_sc[...] + jnp.einsum(
            "hqk,hkd->hqd", p.astype(v.dtype), v,
            preferred_element_type=jnp.float32)
        m_sc[...] = m_new

    # Strictly-below-diagonal KV tiles: fully unmasked, no iota / where work.
    @pl.when(ki < qi)
    def _off_diag():
        online_softmax_update(masked=False)

    # Diagonal KV tile: apply the causal mask, then finalize this query tile.
    @pl.when(ki == qi)
    def _diag_and_finalize():
        online_softmax_update(masked=True)

        # Softmax normalization on the EUP (approx reciprocal).
        attn = acc_sc[...] * pl.reciprocal(l_sc[...], approx=True)  # (H,TQ,dh)
        # Lay attention out lane-dense as (TQ, H*dh) = (TQ, D) and do ONE
        # full-width MXU contraction with wo (item 3).
        attn2d = jnp.concatenate([attn[h] for h in range(n_heads)], axis=-1)
        proj = jnp.dot(attn2d.astype(wo_ref.dtype), wo_ref[...],
                       preferred_element_type=jnp.float32)
        x1 = x_ref[0].astype(jnp.float32) + proj + bo_ref[0].astype(jnp.float32)
        o_ref[0] = x1.astype(o_ref.dtype)


# ---------------------------------------------------------------------------
# Kernel 3: LayerNorm2 + FFN (d_ff-chunked) + residual
#           grid = (B, S // tile_s, d_ff // tile_ff)
# ---------------------------------------------------------------------------
def _ln_ffn_kernel(x1_ref, g2_ref, w1_ref, b1_ref, w2_ref, b2_ref, o_ref,
                   xn_sc, acc_sc):
    f = pl.program_id(2)

    @pl.when(f == 0)
    def _init():
        x1 = x1_ref[0].astype(jnp.float32)
        xn = _layernorm_nobias(x1, g2_ref[0].astype(jnp.float32))
        xn_sc[...] = xn.astype(xn_sc.dtype)                 # LN computed once
        acc_sc[...] = jnp.zeros(acc_sc.shape, jnp.float32)

    # GELU is elementwise over d_ff, so chunking the hidden dim is exact.
    h = jnp.dot(xn_sc[...], w1_ref[...], preferred_element_type=jnp.float32)
    h = _gelu_exact(h + b1_ref[0].astype(jnp.float32))
    acc_sc[...] += jnp.dot(h.astype(w2_ref.dtype), w2_ref[...],
                           preferred_element_type=jnp.float32)

    @pl.when(f == pl.num_programs(2) - 1)
    def _finalize():
        out = (x1_ref[0].astype(jnp.float32) + acc_sc[...]
               + b2_ref[0].astype(jnp.float32))
        o_ref[0] = out.astype(o_ref.dtype)


# ---------------------------------------------------------------------------
# Wrapper
# ---------------------------------------------------------------------------
def decoder_layer(x, params, n_heads, *, tile_s=None, tile_ff=None):
    """DecoderLayer forward.  x: (B, S, D).

    nn.Linear weights are pre-transposed to (in_features, out_features):
      g1 (1,D), wqkv (D,3D), bqkv (1,3D), wo (D,D), bo (1,D),
      g2 (1,D), w1 (D,d_ff), b1 (1,d_ff), w2 (d_ff,D), b2 (1,D).
    Matmuls run in the params' dtype (pass bf16 params for the bf16 MXU path);
    accumulation, LayerNorm and softmax stay in f32.
    """
    B, S, D = x.shape
    assert D % n_heads == 0
    d_head = D // n_heads
    d_ff = params["w1"].shape[1]
    w_dtype = params["wqkv"].dtype

    if tile_s is None:
        # item 1: 256 default (512 is fine on v5e/v6e; 256 respects v7x VMEM).
        tile_s = min(S, 256)
    assert S % tile_s == 0, "seq_len must be a multiple of the sequence tile"
    n_s = S // tile_s
    if tile_ff is None:
        tile_ff = min(d_ff, 2048)
    assert d_ff % tile_ff == 0, "d_ff must be a multiple of the FFN chunk"
    n_ff = d_ff // tile_ff

    vmem_limit = _vmem_limit_bytes()

    # item 5: fold 1/sqrt(d_head) into the q columns (one-time, off the
    # critical path); deletes the per-KV-step VPU scale multiply.
    scale = 1.0 / float(np.sqrt(d_head))
    wqkv = params["wqkv"].at[:, :D].multiply(scale)
    bqkv = params["bqkv"].at[:, :D].multiply(scale)

    # ---- kernel 1: LN1 + QKV (lane-dense (B, S, 3D) slab) ----------------
    qkv = pl.pallas_call(
        _ln_qkv_kernel,
        out_shape=jax.ShapeDtypeStruct((B, S, 3 * D), w_dtype),
        grid_spec=pltpu.PrefetchScalarGridSpec(
            num_scalar_prefetch=0,
            grid=(B, n_s),
            in_specs=[
                pl.BlockSpec((1, tile_s, D), lambda b, s: (b, s, 0)),    # x
                pl.BlockSpec((1, D), lambda b, s: (0, 0)),               # g1
                pl.BlockSpec((D, 3 * D), lambda b, s: (0, 0)),           # wqkv
                pl.BlockSpec((1, 3 * D), lambda b, s: (0, 0)),           # bqkv
            ],
            out_specs=pl.BlockSpec((1, tile_s, 3 * D), lambda b, s: (b, s, 0)),
        ),
        compiler_params=pltpu.CompilerParams(
            dimension_semantics=("parallel", "parallel"),
            vmem_limit_bytes=vmem_limit),
    )(x, params["g1"], wqkv, bqkv)

    # ---- kernel 2: flash attention + out-proj + residual -----------------
    # item 9: triangular schedule -> no grid step is spent above the diagonal.
    qi_list, ki_list = [], []
    for q_i in range(n_s):
        for k_i in range(q_i + 1):
            qi_list.append(q_i)
            ki_list.append(k_i)
    qi_tab = jnp.asarray(qi_list, jnp.int32)
    ki_tab = jnp.asarray(ki_list, jnp.int32)
    num_steps = len(qi_list)

    # The qkv slab is passed three times; the third block axis selects the
    # q / k / v column range (block col 0 / 1 / 2), so no extra HBM traffic.
    def row_q(b, t, qt, kt):
        return (b, qt[t], 0)

    def row_k(b, t, qt, kt):
        return (b, kt[t], 1)

    def row_v(b, t, qt, kt):
        return (b, kt[t], 2)

    def const2(b, t, qt, kt):
        return (0, 0)

    # TODO(synk): for B=1 on v7x, stripe the triangular schedule across the
    # two TensorCores (here only the batch axis is "parallel").
    x1 = pl.pallas_call(
        functools.partial(_flash_attn_kernel, n_heads=n_heads),
        out_shape=jax.ShapeDtypeStruct((B, S, D), x.dtype),
        grid_spec=pltpu.PrefetchScalarGridSpec(
            num_scalar_prefetch=2,
            grid=(B, num_steps),
            in_specs=[
                pl.BlockSpec((1, tile_s, D), row_q),        # x (residual)
                pl.BlockSpec((1, tile_s, D), row_q),        # q columns of qkv
                pl.BlockSpec((1, tile_s, D), row_k),        # k columns of qkv
                pl.BlockSpec((1, tile_s, D), row_v),        # v columns of qkv
                pl.BlockSpec((D, D), const2),               # wo
                pl.BlockSpec((1, D), const2),               # bo
            ],
            out_specs=pl.BlockSpec((1, tile_s, D), row_q),
            scratch_shapes=[
                pltpu.VMEM((n_heads, tile_s, 1), jnp.float32),        # m
                pltpu.VMEM((n_heads, tile_s, 1), jnp.float32),        # l
                pltpu.VMEM((n_heads, tile_s, d_head), jnp.float32),   # acc
            ],
        ),
        compiler_params=pltpu.CompilerParams(
            dimension_semantics=("parallel", "arbitrary"),
            vmem_limit_bytes=vmem_limit),
    )(qi_tab, ki_tab, x, qkv, qkv, qkv, params["wo"], params["bo"])

    # ---- kernel 3: LN2 + FFN (chunked over d_ff) + residual ---------------
    out = pl.pallas_call(
        _ln_ffn_kernel,
        out_shape=jax.ShapeDtypeStruct((B, S, D), x.dtype),
        grid_spec=pltpu.PrefetchScalarGridSpec(
            num_scalar_prefetch=0,
            grid=(B, n_s, n_ff),
            in_specs=[
                pl.BlockSpec((1, tile_s, D), lambda b, s, f: (b, s, 0)),  # x1
                pl.BlockSpec((1, D), lambda b, s, f: (0, 0)),             # g2
                pl.BlockSpec((D, tile_ff), lambda b, s, f: (0, f)),       # w1
                pl.BlockSpec((1, tile_ff), lambda b, s, f: (0, f)),       # b1
                pl.BlockSpec((tile_ff, D), lambda b, s, f: (f, 0)),       # w2
                pl.BlockSpec((1, D), lambda b, s, f: (0, 0)),             # b2
            ],
            out_specs=pl.BlockSpec((1, tile_s, D), lambda b, s, f: (b, s, 0)),
            scratch_shapes=[
                pltpu.VMEM((tile_s, D), w_dtype),           # LN2 output cache
                pltpu.VMEM((tile_s, D), jnp.float32),       # FFN accumulator
            ],
        ),
        compiler_params=pltpu.CompilerParams(
            dimension_semantics=("parallel", "parallel", "arbitrary"),
            vmem_limit_bytes=vmem_limit),
    )(x1, params["g2"], params["w1"], params["b1"], params["w2"], params["b2"])
    return out


# ---------------------------------------------------------------------------
# Pure-JAX reference (mirrors the PyTorch forward)
# ---------------------------------------------------------------------------
def reference(x, params, n_heads):
    B, S, D = x.shape
    d_head = D // n_heads
    xn = _layernorm_nobias(x, params["g1"][0])
    qkv = xn @ params["wqkv"] + params["bqkv"][0]
    q, k, v = jnp.split(qkv, 3, axis=-1)

    def heads(t):
        return t.reshape(B, S, n_heads, d_head).transpose(0, 2, 1, 3)

    q, k, v = heads(q), heads(k), heads(v)
    att = jnp.einsum("bhqd,bhkd->bhqk", q, k) / np.sqrt(d_head)
    mask = np.tril(np.ones((S, S), dtype=bool))
    att = jnp.where(mask[None, None], att, -jnp.inf)
    att = jax.nn.softmax(att, axis=-1)
    out = jnp.einsum("bhqk,bhkd->bhqd", att, v)
    out = out.transpose(0, 2, 1, 3).reshape(B, S, D)
    out = out @ params["wo"] + params["bo"][0]
    x1 = x + out
    x1n = _layernorm_nobias(x1, params["g2"][0])
    h = _gelu_exact(x1n @ params["w1"] + params["b1"][0])
    ff = h @ params["w2"] + params["b2"][0]
    return x1 + ff


if __name__ == "__main__":
    # Small, layout-friendly shapes: d_head = 128 and 128-aligned sequence so
    # the lane-dense paths are exercised; tile_s=128 gives a 2-tile triangular
    # schedule (3 steps) and tile_ff=256 gives a 2-chunk FFN reduction.
    B, S, D, H, DFF = 2, 256, 256, 2, 512
    key = jax.random.PRNGKey(0)
    ks = jax.random.split(key, 12)

    def u(k, shape, fan_in):
        bound = 1.0 / np.sqrt(fan_in)
        return jax.random.uniform(k, shape, jnp.float32, -bound, bound)

    params = {
        "g1":   1.0 + 0.1 * jax.random.normal(ks[9], (1, D), jnp.float32),
        "wqkv": u(ks[0], (D, 3 * D), D),     # pre-transposed Linear weights
        "bqkv": u(ks[1], (1, 3 * D), D),
        "wo":   u(ks[2], (D, D), D),
        "bo":   u(ks[3], (1, D), D),
        "g2":   1.0 + 0.1 * jax.random.normal(ks[10], (1, D), jnp.float32),
        "w1":   u(ks[4], (D, DFF), D),
        "b1":   u(ks[5], (1, DFF), D),
        "w2":   u(ks[6], (DFF, D), DFF),
        "b2":   u(ks[7], (1, D), DFF),
    }
    x = jax.random.normal(ks[8], (B, S, D), jnp.float32)

    # f32 path (tolerance absorbs the approx softmax reciprocal)
    out = jax.block_until_ready(
        decoder_layer(x, params, H, tile_s=128, tile_ff=256))
    ref = reference(x, params, H)
    np.testing.assert_allclose(np.asarray(out), np.asarray(ref),
                               rtol=2e-2, atol=2e-2)

    # bf16 weight path (halves weight/activation DMA bytes, bf16 MXU rate);
    # compared against a reference using the same bf16-rounded weights.
    params_bf16 = {n: p.astype(jnp.bfloat16) for n, p in params.items()}
    out_bf16 = jax.block_until_ready(
        decoder_layer(x, params_bf16, H, tile_s=128, tile_ff=256))
    ref_bf16 = reference(
        x, {n: p.astype(jnp.float32) for n, p in params_bf16.items()}, H)
    np.testing.assert_allclose(np.asarray(out_bf16, dtype=np.float32),
                               np.asarray(ref_bf16), rtol=1.5e-1, atol=1.5e-1)

    print("KERNEL_OK")
</pallas_src>

<mosaic_0001>
module attributes {stable_mosaic.version = 11 : i64} {
  func.func @_ln_qkv_kernel(%arg0: i32, %arg1: i32, %arg2: memref<1x128x256xf32, #tpu.memory_space<vmem>>, %arg3: memref<1x256xf32, #tpu.memory_space<vmem>>, %arg4: memref<256x768xf32, #tpu.memory_space<vmem>>, %arg5: memref<1x768xf32, #tpu.memory_space<vmem>>, %arg6: memref<1x128x768xf32, #tpu.memory_space<vmem>>) attributes {dimension_semantics = [#tpu.dimension_semantics<parallel>, #tpu.dimension_semantics<parallel>], iteration_bounds = array<i64: 2, 2>, scalar_prefetch = 0 : i64, scratch_operands = 0 : i64, tpu.core_type = #tpu.core_type<tc>, window_params = [{transform_indices = @transform_0, window_bounds = array<i64: 1, 128, 256>}, {pipeline_mode = #tpu.pipeline_mode<synchronous>, transform_indices = @transform_1, window_bounds = array<i64: 1, 256>}, {pipeline_mode = #tpu.pipeline_mode<synchronous>, transform_indices = @transform_2, window_bounds = array<i64: 256, 768>}, {pipeline_mode = #tpu.pipeline_mode<synchronous>, transform_indices = @transform_3, window_bounds = array<i64: 1, 768>}, {transform_indices = @transform_4, window_bounds = array<i64: 1, 128, 768>}]} {
    %c0 = arith.constant 0 : index
    %c0_0 = arith.constant 0 : index
    %c0_1 = arith.constant 0 : index
    %0 = vector.load %arg2[%c0, %c0_0, %c0_1] : memref<1x128x256xf32, #tpu.memory_space<vmem>>, vector<1x128x256xf32>
    %1 = vector.shape_cast %0 : vector<1x128x256xf32> to vector<128x256xf32>
    %c0_2 = arith.constant 0 : index
    %c0_3 = arith.constant 0 : index
    %2 = vector.load %arg3[%c0_2, %c0_3] : memref<1x256xf32, #tpu.memory_space<vmem>>, vector<1x256xf32>
    %3 = vector.shape_cast %2 : vector<1x256xf32> to vector<256xf32>
    %cst = arith.constant dense<0.000000e+00> : vector<128xf32>
    %4 = vector.multi_reduction <add>, %1, %cst [1] : vector<128x256xf32> to vector<128xf32>
    %5 = vector.shape_cast %4 : vector<128xf32> to vector<128x1xf32>
    %cst_4 = arith.constant 2.560000e+02 : f32
    %6 = vector.broadcast %cst_4 : f32 to vector<128x1xf32>
    %7 = arith.divf %5, %6 : vector<128x1xf32>
    %8 = vector.broadcast %7 : vector<128x1xf32> to vector<128x256xf32>
    %9 = arith.subf %1, %8 : vector<128x256xf32>
    %10 = arith.mulf %9, %9 : vector<128x256xf32>
    %cst_5 = arith.constant dense<0.000000e+00> : vector<128xf32>
    %11 = vector.multi_reduction <add>, %10, %cst_5 [1] : vector<128x256xf32> to vector<128xf32>
    %12 = vector.shape_cast %11 : vector<128xf32> to vector<128x1xf32>
    %cst_6 = arith.constant 2.560000e+02 : f32
    %13 = vector.broadcast %cst_6 : f32 to vector<128x1xf32>
    %14 = arith.divf %12, %13 : vector<128x1xf32>
    %15 = vector.broadcast %7 : vector<128x1xf32> to vector<128x256xf32>
    %16 = arith.subf %1, %15 : vector<128x256xf32>
    %cst_7 = arith.constant 9.99999974E-6 : f32
    %17 = vector.broadcast %cst_7 : f32 to vector<128x1xf32>
    %18 = arith.addf %14, %17 : vector<128x1xf32>
    %19 = math.rsqrt %18 : vector<128x1xf32>
    %20 = vector.broadcast %19 : vector<128x1xf32> to vector<128x256xf32>
    %21 = arith.mulf %16, %20 : vector<128x256xf32>
    %22 = vector.shape_cast %3 : vector<256xf32> to vector<1x256xf32>
    %23 = vector.broadcast %22 : vector<1x256xf32> to vector<128x256xf32>
    %24 = arith.mulf %21, %23 : vector<128x256xf32>
    %c0_8 = arith.constant 0 : index
    %c0_9 = arith.constant 0 : index
    %25 = vector.load %arg4[%c0_8, %c0_9] : memref<256x768xf32, #tpu.memory_space<vmem>>, vector<256x768xf32>
    %cst_10 = arith.constant dense<0.000000e+00> : vector<128x768xf32>
    %26 = tpu.matmul %24, %25, %cst_10 {dimension_numbers = #tpu.dot_dimension_numbers<[1], [0], [0], [1], [0, 0, 1, 1], [], []>} : vector<128x256xf32>, vector<256x768xf32>, vector<128x768xf32> -> vector<128x768xf32>
    %c0_11 = arith.constant 0 : index
    %c0_12 = arith.constant 0 : index
    %27 = vector.load %arg5[%c0_11, %c0_12] : memref<1x768xf32, #tpu.memory_space<vmem>>, vector<1x768xf32>
    %28 = vector.shape_cast %27 : vector<1x768xf32> to vector<768xf32>
    %29 = vector.shape_cast %28 : vector<768xf32> to vector<1x768xf32>
    %30 = vector.broadcast %29 : vector<1x768xf32> to vector<128x768xf32>
    %31 = arith.addf %26, %30 : vector<128x768xf32>
    %c0_13 = arith.constant 0 : index
    %c0_14 = arith.constant 0 : index
    %c0_15 = arith.constant 0 : index
    %32 = vector.load %arg6[%c0_13, %c0_14, %c0_15] : memref<1x128x768xf32, #tpu.memory_space<vmem>>, vector<1x128x768xf32>
    %33 = vector.shape_cast %32 : vector<1x128x768xf32> to vector<128x768xf32>
    %34 = vector.shape_cast %31 : vector<128x768xf32> to vector<1x128x768xf32>
    tpu.vector_store %arg6[%c0_13, %c0_14, %c0_15], %34 {strides = array<i32>} : memref<1x128x768xf32, #tpu.memory_space<vmem>>, vector<1x128x768xf32>,
    return
  }
  func.func @transform_0(%arg0: i32, %arg1: i32) -> (i32, i32, i32) {
    %c0_i32 = arith.constant 0 : i32
    %c0_i32_0 = arith.constant 0 : i32
    return %arg0, %arg1, %c0_i32 : i32, i32, i32
  }
  func.func @transform_1(%arg0: i32, %arg1: i32) -> (i32, i32) {
    %c0_i32 = arith.constant 0 : i32
    %c0_i32_0 = arith.constant 0 : i32
    %c0_i32_1 = arith.constant 0 : i32
    return %c0_i32, %c0_i32_0 : i32, i32
  }
  func.func @transform_2(%arg0: i32, %arg1: i32) -> (i32, i32) {
    %c0_i32 = arith.constant 0 : i32
    %c0_i32_0 = arith.constant 0 : i32
    %c0_i32_1 = arith.constant 0 : i32
    return %c0_i32, %c0_i32_0 : i32, i32
  }
  func.func @transform_3(%arg0: i32, %arg1: i32) -> (i32, i32) {
    %c0_i32 = arith.constant 0 : i32
    %c0_i32_0 = arith.constant 0 : i32
    %c0_i32_1 = arith.constant 0 : i32
    return %c0_i32, %c0_i32_0 : i32, i32
  }
  func.func @transform_4(%arg0: i32, %arg1: i32) -> (i32, i32, i32) {
    %c0_i32 = arith.constant 0 : i32
    %c0_i32_0 = arith.constant 0 : i32
    return %arg0, %arg1, %c0_i32 : i32, i32, i32
  }
}

</mosaic_0001>

<llo_original>
// kernel: tpu_custom_call.1
$region0: #{tpu_custom_call.1}
  #allocation0 [shape = 'u32[]', space=smem, size = 0x4, offset = 0x4, fixed_abs, tag = 'smem constant byte address 0x4 - core index']
  #allocation1 [shape = 'u32[144,128]{1,0:T(1,128)}', space=vmem, size = 0x12000, scoped, tag = 'internal scratch']
  %s0 = inlined_call_operand.hbm [shape: f32[2,256,256], index: 0, kind: input, shape index: {}]
  %s1 = inlined_call_operand.hbm [shape: f32[1,256], index: 1, kind: input, shape index: {}]
  %s2 = inlined_call_operand.hbm [shape: f32[256,768], index: 2, kind: input, shape index: {}]
  %s3 = inlined_call_operand.hbm [shape: f32[1,768], index: 3, kind: input, shape index: {}]
  %s4 = inlined_call_operand.hbm [shape: f32[2,256,768], index: 4, kind: output, shape index: {}]
  %s5 = sld [smem:[#allocation0]]
  $region65: #{tpu_custom_call.1} parent=0
    _
  %s7 = ssub.s32 1, %s5
  %s8 = scalar_select 0, %s7, %s5
  $region1: #{tpu_custom_call.1} parent=0
    #allocation2 [shape = 'u8[262144]{0}', space=vmem, size = 0x40000, scoped, tag = 'input window, operand 0']
    #allocation3 [shape = 's32[2]{0}', space=sflag, size = 0x8, scoped, tag = 'scoped memory for tpu_custom_call.1']
    #allocation4 [shape = 's32[2]{0}', space=sflag, size = 0x8, scoped, tag = 'scoped memory for tpu_custom_call.1']
    #allocation5 [shape = 'u8[1024]{0}', space=vmem, size = 0x400, scoped, tag = 'input window, operand 1, single buffered']
    #allocation6 [shape = 's32[1]{0}', space=sflag, size = 0x4, scoped, tag = 'scoped memory for tpu_custom_call.1']
    #allocation7 [shape = 'u8[786432]{0}', space=vmem, size = 0xc0000, scoped, tag = 'input window, operand 2, single buffered']
    #allocation8 [shape = 'u8[3072]{0}', space=vmem, size = 0xc00, scoped, tag = 'input window, operand 3, single buffered']
    #allocation9 [shape = 's32[1]{0}', space=sflag, size = 0x4, scoped, tag = 'scoped memory for tpu_custom_call.1']
    #allocation10 [shape = 'u8[786432]{0}', space=vmem, size = 0xc0000, scoped, tag = 'output window, operand 0']
    %9 = vsyncpa [#allocation3], 0
    %s10 = scalar_lea.sflag [#allocation3], 1
    %11 = vsyncpa %s10, 0
    %12 = vsyncpa [#allocation6], 0
    %13 = vsyncpa [#allocation9], 0
    %14 = vsyncpa [#allocation4], 0
    %s15 = scalar_lea.sflag [#allocation4], 1
    %16 = vsyncpa %s15, 0
    loop: start=0, step=1, limit=6
    $region2: #{tpu_custom_call.1} parent=1 // loop_pre_header
      _
    $region3: #{tpu_custom_call.1} parent=1 // loop_header
      %s18 = sphi 0, %s22
      %p19 = scmp.ge.s32.totalorder %s18, 6
      %s25 = sphi 0, %s37
      %s26 = sphi 0, %s33
      %s27 = sphi 0, %s25
      %s28 = sphi 0, %s26
      %s29 = sphi 0, %s27
      %s30 = sphi 0, %s28
      %s42 = sphi 0, %s44
      %s45 = sphi 0, %s42
      %s46 = sphi 0, %s45
      %s62 = sphi 0, %s46
      %s66 = sphi 0, %s66
      %s68 = sphi 0, %s66
      %s69 = sphi 0, %s68
      %s83 = sphi 0, %s69
      %s87 = sphi 0, %s87
      %s89 = sphi 0, %s87
      %s90 = sphi 0, %s89
      %s104 = sphi 0, %s90
      %s108 = sphi 0, %s108
      %s110 = sphi 0, %s108
      %s111 = sphi 0, %s110
      %s125 = sphi 0, %s111
      %s133 = sphi 0, %s135
      %s136 = sphi 0, %s133
      %s137 = sphi 0, %s136
      %s153 = sphi 0, %s137
    $region4: #{tpu_custom_call.1} parent=1 // loop_header_branch
      %21 = sbr.rel (%p19) target = $region8
    $region5: #{tpu_custom_call.1} parent=1 // loop_body
      %s23 = ssub.s32 %s18, 1
      %s24 = ssub.s32 %s18, 2
      %s31 = sadd.s32 1, %s26
      %p32 = scmp.ge.s32.totalorder %s31, 2
      %s33 = scalar_select %p32, 0, %s31
      %s34 = sadd.s32 1, %s25
      %s35 = scalar_select %p32, %s34, %s25
      %p36 = scmp.ge.s32.totalorder %s35, 2
      %s37 = scalar_select %p36, 0, %s35
      %s38 = ssub.s32 %s25, %s37
      %s39 = ssub.s32 %s26, %s33
      %s40 = sor.u32 %s38, %s39
      %p41 = scmp.eq.s32.totalorder %s40, 0
      %s43 = sadd.s32 %s42, 1
      %s44 = scalar_select %p41, %s42, %s43
      %p47 = pneg %p41
      %p48 = scmp.eq.s32.totalorder %s18, 3
      %p49 = por %p47, %p48
      %p50 = scmp.ne.s32.totalorder %s42, %s45
      %p51 = scmp.eq.s32.totalorder %s18, 0
      %p52 = por %p50, %p51
      %p53 = scmp.ne.s32.totalorder %s42, %s45
      %p54 = scmp.eq.s32.totalorder %s23, 3
      %p55 = por %p53, %p54
      %p56 = scmp.ne.s32.totalorder %s45, %s46
      %p57 = scmp.eq.s32.totalorder %s23, 0
      %p58 = por %p56, %p57
      %p59 = scmp.ne.s32.totalorder %s45, %s46
      %p60 = scmp.eq.s32.totalorder %s24, 3
      %p61 = por %p59, %p60
      %p63 = scmp.ne.s32.totalorder %s46, %s62
      %p64 = scmp.eq.s32.totalorder %s24, 0
      %p65 = por %p63, %p64
      %s67 = sadd.s32 %s66, 1
      %p70 = scmp.eq.s32.totalorder %s18, 3
      %p71 = scmp.ne.s32.totalorder %s66, %s68
      %p72 = scmp.eq.s32.totalorder %s18, 0
      %p73 = por %p71, %p72
      %p74 = scmp.ne.s32.totalorder %s66, %s68
      %p75 = scmp.eq.s32.totalorder %s23, 3
      %p76 = por %p74, %p75
      %p77 = scmp.ne.s32.totalorder %s68, %s69
      %p78 = scmp.eq.s32.totalorder %s23, 0
      %p79 = por %p77, %p78
      %p80 = scmp.ne.s32.totalorder %s68, %s69
      %p81 = scmp.eq.s32.totalorder %s24, 3
      %p82 = por %p80, %p81
      %p84 = scmp.ne.s32.totalorder %s69, %s83
      %p85 = scmp.eq.s32.totalorder %s24, 0
      %p86 = por %p84, %p85
      %s88 = sadd.s32 %s87, 1
      %p91 = scmp.eq.s32.totalorder %s18, 3
      %p92 = scmp.ne.s32.totalorder %s87, %s89
      %p93 = scmp.eq.s32.totalorder %s18, 0
      %p94 = por %p92, %p93
      %p95 = scmp.ne.s32.totalorder %s87, %s89
      %p96 = scmp.eq.s32.totalorder %s23, 3
      %p97 = por %p95, %p96
      %p98 = scmp.ne.s32.totalorder %s89, %s90
      %p99 = scmp.eq.s32.totalorder %s23, 0
      %p100 = por %p98, %p99
      %p101 = scmp.ne.s32.totalorder %s89, %s90
      %p102 = scmp.eq.s32.totalorder %s24, 3
      %p103 = por %p101, %p102
      %p105 = scmp.ne.s32.totalorder %s90, %s104
      %p106 = scmp.eq.s32.totalorder %s24, 0
      %p107 = por %p105, %p106
      %s109 = sadd.s32 %s108, 1
      %p112 = scmp.eq.s32.totalorder %s18, 3
      %p113 = scmp.ne.s32.totalorder %s108, %s110
      %p114 = scmp.eq.s32.totalorder %s18, 0
      %p115 = por %p113, %p114
      %p116 = scmp.ne.s32.totalorder %s108, %s110
      %p117 = scmp.eq.s32.totalorder %s23, 3
      %p118 = por %p116, %p117
      %p119 = scmp.ne.s32.totalorder %s110, %s111
      %p120 = scmp.eq.s32.totalorder %s23, 0
      %p121 = por %p119, %p120
      %p122 = scmp.ne.s32.totalorder %s110, %s111
      %p123 = scmp.eq.s32.totalorder %s24, 3
      %p124 = por %p122, %p123
      %p126 = scmp.ne.s32.totalorder %s111, %s125
      %p127 = scmp.eq.s32.totalorder %s24, 0
      %p128 = por %p126, %p127
      %s129 = ssub.s32 %s25, %s37
      %s130 = ssub.s32 %s26, %s33
      %s131 = sor.u32 %s129, %s130
      %p132 = scmp.eq.s32.totalorder %s131, 0
      %s134 = sadd.s32 %s133, 1
      %s135 = scalar_select %p132, %s133, %s134
      %p138 = pneg %p132
      %p139 = scmp.eq.s32.totalorder %s18, 3
      %p140 = por %p138, %p139
      %p141 = scmp.ne.s32.totalorder %s133, %s136
      %p142 = scmp.eq.s32.totalorder %s18, 0
      %p143 = por %p141, %p142
      %p144 = scmp.ne.s32.totalorder %s133, %s136
      %p145 = scmp.eq.s32.totalorder %s23, 3
      %p146 = por %p144, %p145
      %p147 = scmp.ne.s32.totalorder %s136, %s137
      %p148 = scmp.eq.s32.totalorder %s23, 0
      %p149 = por %p147, %p148
      %p150 = scmp.ne.s32.totalorder %s136, %s137
      %p151 = scmp.eq.s32.totalorder %s24, 3
      %p152 = por %p150, %p151
      %p154 = scmp.ne.s32.totalorder %s137, %s153
      %p155 = scmp.eq.s32.totalorder %s24, 0
      %p156 = por %p154, %p155
      %p157 = scmp.le.s32.totalorder 1, %s18
      %p158 = scmp.lt.s32.totalorder %s18, 5
      %p159 = pnand %p157, %p158
      %p160 = pneg %p159
      // Predicated region
      $region9: #{tpu_custom_call.1} parent=5 // pred_check
        _
      $region10: #{tpu_custom_call.1} parent=5 // pred_check_branch
        %162 = sbr.rel (%p159) target = $region12
      $region11: #{tpu_custom_call.1} parent=5 // pred_region
        %s163 = ssub.s32 %s18, 1
        // Predicated region
        $region13: #{tpu_custom_call.1} parent=11 // pred_check
          %p164 = pneg %p79
        $region14: #{tpu_custom_call.1} parent=11 // pred_check_branch
          %166 = sbr.rel (%p164) target = $region16
        $region15: #{tpu_custom_call.1} parent=11 // pred_region
          %s168 = ssub.s32 32, 32
          %169 = vsyncadd [#allocation6], %s168
          %s171 = sshll.u32 [#allocation5], 4
          %s172 = int_to_ptr.vmem [resolvable:$true] %s171
          %174 = dma.hbm_to_vmem [thread:$0]  %s1, 32, %s172, [#allocation6]
        $region16: #{tpu_custom_call.1} parent=11 // pred_fallthru
          _
        // Predicated region
        $region17: #{tpu_custom_call.1} parent=11 // pred_check
          %p175 = pneg %p100
        $region18: #{tpu_custom_call.1} parent=11 // pred_check_branch
          %177 = sbr.rel (%p175) target = $region20
        $region19: #{tpu_custom_call.1} parent=11 // pred_region
          %s179 = ssub.s32 24576, 24576
          %180 = vsyncadd [#allocation6], %s179
          %s181 = sshll.u32 [#allocation7], 4
          %s182 = int_to_ptr.vmem [resolvable:$true] %s181
          %187 = dma.hbm_to_vmem [thread:$0]  %s2, 24576, %s182, [#allocation6], 768, 768, 48
        $region20: #{tpu_custom_call.1} parent=11 // pred_fallthru
          _
        // Predicated region
        $region21: #{tpu_custom_call.1} parent=11 // pred_check
          %p188 = pneg %p121
        $region22: #{tpu_custom_call.1} parent=11 // pred_check_branch
          %190 = sbr.rel (%p188) target = $region24
        $region23: #{tpu_custom_call.1} parent=11 // pred_region
          %s192 = ssub.s32 96, 96
          %193 = vsyncadd [#allocation9], %s192
          %s195 = sshll.u32 [#allocation8], 4
          %s196 = int_to_ptr.vmem [resolvable:$true] %s195
          %198 = dma.hbm_to_vmem [thread:$0]  %s3, 96, %s196, [#allocation9]
        $region24: #{tpu_custom_call.1} parent=11 // pred_fallthru
          _
      $region12: #{tpu_custom_call.1} parent=5 // pred_fallthru
        _
      %p199 = scmp.lt.s32.totalorder %s18, 4
      // Predicated region
      $region25: #{tpu_custom_call.1} parent=5 // pred_check
        %p200 = pneg %p199
      $region26: #{tpu_custom_call.1} parent=5 // pred_check_branch
        %202 = sbr.rel (%p200) target = $region28
      $region27: #{tpu_custom_call.1} parent=5 // pred_region
        // Predicated region
        $region29: #{tpu_custom_call.1} parent=27 // pred_check
          %p203 = pneg %p52
        $region30: #{tpu_custom_call.1} parent=27 // pred_check_branch
          %205 = sbr.rel (%p203) target = $region32
        $region31: #{tpu_custom_call.1} parent=27 // pred_region
          %s206 = sand.u32 %s42, 1
          %s207 = scalar_lea.sflag [#allocation3], %s206
          %s208 = sand.u32 %s42, 1
          %s209 = smul.addr %s208, 256
          %s210 = scalar_lea.vmem [#allocation2], %s209
          %s211 = smul.u32 16, %s26
          %s213 = ssub.s32 4096, 4096
          %214 = vsyncadd %s207, %s213
          %s215 = smul.addr %s211, 2
          %s216 = smul.addr %s25, 64
          %s217 = sadd.s32 %s215, %s216
          %s218 = smul.addr %s217, 128
          %s219 = scalar_lea.hbm %s0, %s218
          %s220 = sshll.u32 %s210, 4
          %s221 = int_to_ptr.vmem [resolvable:$true] %s220
          %226 = dma.hbm_to_vmem [thread:$0]  %s219, 4096, %s221, %s207, 256, 256, 16
        $region32: #{tpu_custom_call.1} parent=27 // pred_fallthru
          _
      $region28: #{tpu_custom_call.1} parent=5 // pred_fallthru
        _
      %p227 = scmp.le.s32.totalorder 1, %s18
      %p228 = scmp.lt.s32.totalorder %s18, 5
      %p229 = pnand %p227, %p228
      %p230 = pneg %p229
      // Predicated region
      $region33: #{tpu_custom_call.1} parent=5 // pred_check
        _
      $region34: #{tpu_custom_call.1} parent=5 // pred_check_branch
        %232 = sbr.rel (%p229) target = $region36
      $region35: #{tpu_custom_call.1} parent=5 // pred_region
        %s233 = ssub.s32 %s18, 1
        %s234 = sand.u32 %s45, 1
        %s235 = scalar_lea.sflag [#allocation3], %s234
        %s236 = sand.u32 %s45, 1
        %s237 = smul.addr %s236, 256
        %s238 = scalar_lea.vmem [#allocation2], %s237
        // Predicated region
        $region37: #{tpu_custom_call.1} parent=35 // pred_check
          %p239 = pneg %p58
        $region38: #{tpu_custom_call.1} parent=35 // pred_check_branch
          %241 = sbr.rel (%p239) target = $region40
        $region39: #{tpu_custom_call.1} parent=35 // pred_region
          %242 = dma.done %s235, 4096
        $region40: #{tpu_custom_call.1} parent=35 // pred_fallthru
          _
        // Predicated region
        $region41: #{tpu_custom_call.1} parent=35 // pred_check
          %p243 = pneg %p79
        $region42: #{tpu_custom_call.1} parent=35 // pred_check_branch
          %245 = sbr.rel (%p243) target = $region44
        $region43: #{tpu_custom_call.1} parent=35 // pred_region
          %246 = dma.done [#allocation6], 32
        $region44: #{tpu_custom_call.1} parent=35 // pred_fallthru
          _
        // Predicated region
        $region45: #{tpu_custom_call.1} parent=35 // pred_check
          %p247 = pneg %p100
        $region46: #{tpu_custom_call.1} parent=35 // pred_check_branch
          %249 = sbr.rel (%p247) target = $region48
        $region47: #{tpu_custom_call.1} parent=35 // pred_region
          %250 = dma.done [#allocation6], 24576
        $region48: #{tpu_custom_call.1} parent=35 // pred_fallthru
          _
        // Predicated region
        $region49: #{tpu_custom_call.1} parent=35 // pred_check
          %p251 = pneg %p121
        $region50: #{tpu_custom_call.1} parent=35 // pred_check_branch
          %253 = sbr.rel (%p251) target = $region52
        $region51: #{tpu_custom_call.1} parent=35 // pred_region
          %254 = dma.done [#allocation9], 96
        $region52: #{tpu_custom_call.1} parent=35 // pred_fallthru
          _
        %s255 = sand.u32 %s45, 1
        %s256 = scalar_lea.sflag [#allocation3], %s255
        %s257 = sand.u32 %s45, 1
        %s258 = smul.addr %s257, 256
        %s259 = scalar_lea.vmem [#allocation2], %s258
        %p260 = pneg %p58
        %p261 = pneg %p55
        %p262 = pneg %p79
        %p263 = pneg %p76
        %p264 = pneg %p100
        %p265 = pneg %p97
        %p266 = pneg %p121
        %p267 = pneg %p118
        %p268 = pneg %p149
        %p269 = pneg %p146
        %s270 = sand.u32 %s136, 1
        %s271 = scalar_lea.sflag [#allocation4], %s270
        %s272 = sand.u32 %s136, 1
        %s273 = smul.addr %s272, 768
        %s274 = scalar_lea.vmem [#allocation10], %s273
        %s275 = smul.u32 16, %s28
        %s276 = smul.u32 16, %s28
        %v277 = vld [vmem:[%s238] sm:$0xff]
        %v278 = vld [vmem:[%s238 + $0x8] sm:$0xff]
        %v279 = vld [vmem:[%s238 + $0x10] sm:$0xff]
        %v280 = vld [vmem:[%s238 + $0x18] sm:$0xff]
        %v281 = vld [vmem:[%s238 + $0x20] sm:$0xff]
        %v282 = vld [vmem:[%s238 + $0x28] sm:$0xff]
        %v283 = vld [vmem:[%s238 + $0x30] sm:$0xff]
        %v284 = vld [vmem:[%s238 + $0x38] sm:$0xff]
        %v285 = vld [vmem:[%s238 + $0x40] sm:$0xff]
        %v286 = vld [vmem:[%s238 + $0x48] sm:$0xff]
        %v287 = vld [vmem:[%s238 + $0x50] sm:$0xff]
        %v288 = vld [vmem:[%s238 + $0x58] sm:$0xff]
        %v289 = vld [vmem:[%s238 + $0x60] sm:$0xff]
        %v290 = vld [vmem:[%s238 + $0x68] sm:$0xff]
        %v291 = vld [vmem:[%s238 + $0x70] sm:$0xff]
        %v292 = vld [vmem:[%s238 + $0x78] sm:$0xff]
        %v293 = vld [vmem:[%s238 + $0x80] sm:$0xff]
        %v294 = vld [vmem:[%s238 + $0x88] sm:$0xff]
        %v295 = vld [vmem:[%s238 + $0x90] sm:$0xff]
        %v296 = vld [vmem:[%s238 + $0x98] sm:$0xff]
        %v297 = vld [vmem:[%s238 + $0xa0] sm:$0xff]
        %v298 = vld [vmem:[%s238 + $0xa8] sm:$0xff]
        %v299 = vld [vmem:[%s238 + $0xb0] sm:$0xff]
        %v300 = vld [vmem:[%s238 + $0xb8] sm:$0xff]
        %v301 = vld [vmem:[%s238 + $0xc0] sm:$0xff]
        %v302 = vld [vmem:[%s238 + $0xc8] sm:$0xff]
        %v303 = vld [vmem:[%s238 + $0xd0] sm:$0xff]
        %v304 = vld [vmem:[%s238 + $0xd8] sm:$0xff]
        %v305 = vld [vmem:[%s238 + $0xe0] sm:$0xff]
        %v306 = vld [vmem:[%s238 + $0xe8] sm:$0xff]
        %v307 = vld [vmem:[%s238 + $0xf0] sm:$0xff]
        %v308 = vld [vmem:[%s238 + $0xf8] sm:$0xff]
        %v309 = vld [vmem:[#allocation5] sm:$0x3]
        %v310 = vadd.f32 %v277, %v278
        %311 = vadd.xlane.f32.xlu0 %v310
        %v312 = vpop.xlane.xlu0 %311
        %v313 = vadd.f32 %v279, %v280
        %314 = vadd.xlane.f32.xlu0 %v313
        %v315 = vpop.xlane.xlu0 %314
        %v316 = vadd.f32 %v281, %v282
        %317 = vadd.xlane.f32.xlu0 %v316
        %v318 = vpop.xlane.xlu0 %317
        %v319 = vadd.f32 %v283, %v284
        %320 = vadd.xlane.f32.xlu0 %v319
        %v321 = vpop.xlane.xlu0 %320
        %v322 = vadd.f32 %v285, %v286
        %323 = vadd.xlane.f32.xlu0 %v322
        %v324 = vpop.xlane.xlu0 %323
        %v325 = vadd.f32 %v287, %v288
        %326 = vadd.xlane.f32.xlu0 %v325
        %v327 = vpop.xlane.xlu0 %326
        %v328 = vadd.f32 %v289, %v290
        %329 = vadd.xlane.f32.xlu0 %v328
        %v330 = vpop.xlane.xlu0 %329
        %v331 = vadd.f32 %v291, %v292
        %332 = vadd.xlane.f32.xlu0 %v331
        %v333 = vpop.xlane.xlu0 %332
        %v334 = vadd.f32 %v293, %v294
        %335 = vadd.xlane.f32.xlu0 %v334
        %v336 = vpop.xlane.xlu0 %335
        %v337 = vadd.f32 %v295, %v296
        %338 = vadd.xlane.f32.xlu0 %v337
        %v339 = vpop.xlane.xlu0 %338
        %v340 = vadd.f32 %v297, %v298
        %341 = vadd.xlane.f32.xlu0 %v340
        %v342 = vpop.xlane.xlu0 %341
        %v343 = vadd.f32 %v299, %v300
        %344 = vadd.xlane.f32.xlu0 %v343
        %v345 = vpop.xlane.xlu0 %344
        %v346 = vadd.f32 %v301, %v302
        %347 = vadd.xlane.f32.xlu0 %v346
        %v348 = vpop.xlane.xlu0 %347
        %v349 = vadd.f32 %v303, %v304
        %350 = vadd.xlane.f32.xlu0 %v349
        %v351 = vpop.xlane.xlu0 %350
        %v352 = vadd.f32 %v305, %v306
        %353 = vadd.xlane.f32.xlu0 %v352
        %v354 = vpop.xlane.xlu0 %353
        %v355 = vadd.f32 %v307, %v308
        %356 = vadd.xlane.f32.xlu0 %v355
        %v357 = vpop.xlane.xlu0 %356
        %v358 = vrcp.pop 256.0
        %v359 = vmul.f32 %v312, %v358
        %v360 = vmul.f32 %v315, %v358
        %v361 = vmul.f32 %v318, %v358
        %v362 = vmul.f32 %v321, %v358
        %v363 = vmul.f32 %v324, %v358
        %v364 = vmul.f32 %v327, %v358
        %v365 = vmul.f32 %v330, %v358
        %v366 = vmul.f32 %v333, %v358
        %v367 = vmul.f32 %v336, %v358
        %v368 = vmul.f32 %v339, %v358
        %v369 = vmul.f32 %v342, %v358
        %v370 = vmul.f32 %v345, %v358
        %v371 = vmul.f32 %v348, %v358
        %v372 = vmul.f32 %v351, %v358
        %v373 = vmul.f32 %v354, %v358
        %v374 = vmul.f32 %v357, %v358
        %v375 = vsub.f32 %v277, %v359
        %v376 = vsub.f32 %v278, %v359
        %v377 = vsub.f32 %v279, %v360
        %v378 = vsub.f32 %v280, %v360
        %v379 = vsub.f32 %v281, %v361
        %v380 = vsub.f32 %v282, %v361
        %v381 = vsub.f32 %v283, %v362
        %v382 = vsub.f32 %v284, %v362
        %v383 = vsub.f32 %v285, %v363
        %v384 = vsub.f32 %v286, %v363
        %v385 = vsub.f32 %v287, %v364
        %v386 = vsub.f32 %v288, %v364
        %v387 = vsub.f32 %v289, %v365
        %v388 = vsub.f32 %v290, %v365
        %v389 = vsub.f32 %v291, %v366
        %v390 = vsub.f32 %v292, %v366
        %v391 = vsub.f32 %v293, %v367
        %v392 = vsub.f32 %v294, %v367
        %v393 = vsub.f32 %v295, %v368
        %v394 = vsub.f32 %v296, %v368
        %v395 = vsub.f32 %v297, %v369
        %v396 = vsub.f32 %v298, %v369
        %v397 = vsub.f32 %v299, %v370
        %v398 = vsub.f32 %v300, %v370
        %v399 = vsub.f32 %v301, %v371
        %v400 = vsub.f32 %v302, %v371
        %v401 = vsub.f32 %v303, %v372
        %v402 = vsub.f32 %v304, %v372
        %v403 = vsub.f32 %v305, %v373
        %v404 = vsub.f32 %v306, %v373
        %v405 = vsub.f32 %v307, %v374
        %v406 = vsub.f32 %v308, %v374
        %v407 = vmul.f32 %v375, %v375
        %v408 = vmul.f32 %v376, %v376
        %v409 = vmul.f32 %v377, %v377
        %v410 = vmul.f32 %v378, %v378
        %v411 = vmul.f32 %v379, %v379
        %v412 = vmul.f32 %v380, %v380
        %v413 = vmul.f32 %v381, %v381
        %v414 = vmul.f32 %v382, %v382
        %v415 = vmul.f32 %v383, %v383
        %v416 = vmul.f32 %v384, %v384
        %v417 = vmul.f32 %v385, %v385
        %v418 = vmul.f32 %v386, %v386
        %v419 = vmul.f32 %v387, %v387
        %v420 = vmul.f32 %v388, %v388
        %v421 = vmul.f32 %v389, %v389
        %v422 = vmul.f32 %v390, %v390
        %v423 = vmul.f32 %v391, %v391
        %v424 = vmul.f32 %v392, %v392
        %v425 = vmul.f32 %v393, %v393
        %v426 = vmul.f32 %v394, %v394
        %v427 = vmul.f32 %v395, %v395
        %v428 = vmul.f32 %v396, %v396
        %v429 = vmul.f32 %v397, %v397
        %v430 = vmul.f32 %v398, %v398
        %v431 = vmul.f32 %v399, %v399
        %v432 = vmul.f32 %v400, %v400
        %v433 = vmul.f32 %v401, %v401
        %v434 = vmul.f32 %v402, %v402
        %v435 = vmul.f32 %v403, %v403
        %v436 = vmul.f32 %v404, %v404
        %v437 = vmul.f32 %v405, %v405
        %v438 = vmul.f32 %v406, %v406
        %v439 = vadd.f32 %v407, %v408
        %440 = vadd.xlane.f32.xlu0 %v439
        %v441 = vpop.xlane.xlu0 %440
        %v442 = vadd.f32 %v409, %v410
        %443 = vadd.xlane.f32.xlu0 %v442
        %v444 = vpop.xlane.xlu0 %443
        %v445 = vadd.f32 %v411, %v412
        %446 = vadd.xlane.f32.xlu0 %v445
        %v447 = vpop.xlane.xlu0 %446
        %v448 = vadd.f32 %v413, %v414
        %449 = vadd.xlane.f32.xlu0 %v448
        %v450 = vpop.xlane.xlu0 %449
        %v451 = vadd.f32 %v415, %v416
        %452 = vadd.xlane.f32.xlu0 %v451
        %v453 = vpop.xlane.xlu0 %452
        %v454 = vadd.f32 %v417, %v418
        %455 = vadd.xlane.f32.xlu0 %v454
        %v456 = vpop.xlane.xlu0 %455
        %v457 = vadd.f32 %v419, %v420
        %458 = vadd.xlane.f32.xlu0 %v457
        %v459 = vpop.xlane.xlu0 %458
        %v460 = vadd.f32 %v421, %v422
        %461 = vadd.xlane.f32.xlu0 %v460
        %v462 = vpop.xlane.xlu0 %461
        %v463 = vadd.f32 %v423, %v424
        %464 = vadd.xlane.f32.xlu0 %v463
        %v465 = vpop.xlane.xlu0 %464
        %v466 = vadd.f32 %v425, %v426
        %467 = vadd.xlane.f32.xlu0 %v466
        %v468 = vpop.xlane.xlu0 %467
        %v469 = vadd.f32 %v427, %v428
        %470 = vadd.xlane.f32.xlu0 %v469
        %v471 = vpop.xlane.xlu0 %470
        %v472 = vadd.f32 %v429, %v430
        %473 = vadd.xlane.f32.xlu0 %v472
        %v474 = vpop.xlane.xlu0 %473
        %v475 = vadd.f32 %v431, %v432
        %476 = vadd.xlane.f32.xlu0 %v475
        %v477 = vpop.xlane.xlu0 %476
        %v478 = vadd.f32 %v433, %v434
        %479 = vadd.xlane.f32.xlu0 %v478
        %v480 = vpop.xlane.xlu0 %479
        %v481 = vadd.f32 %v435, %v436
        %482 = vadd.xlane.f32.xlu0 %v481
        %v483 = vpop.xlane.xlu0 %482
        %v484 = vadd.f32 %v437, %v438
        %485 = vadd.xlane.f32.xlu0 %v484
        %v486 = vpop.xlane.xlu0 %485
        %v487 = vmul.f32 %v441, %v358
        %v488 = vmul.f32 %v444, %v358
        %v489 = vmul.f32 %v447, %v358
        %v490 = vmul.f32 %v450, %v358
        %v491 = vmul.f32 %v453, %v358
        %v492 = vmul.f32 %v456, %v358
        %v493 = vmul.f32 %v459, %v358
        %v494 = vmul.f32 %v462, %v358
        %v495 = vmul.f32 %v465, %v358
        %v496 = vmul.f32 %v468, %v358
        %v497 = vmul.f32 %v471, %v358
        %v498 = vmul.f32 %v474, %v358
        %v499 = vmul.f32 %v477, %v358
        %v500 = vmul.f32 %v480, %v358
        %v501 = vmul.f32 %v483, %v358
        %v502 = vmul.f32 %v486, %v358
        %v503 = vadd.f32 %v487, 1e-05
        %v504 = vadd.f32 %v488, 1e-05
        %v505 = vadd.f32 %v489, 1e-05
        %v506 = vadd.f32 %v490, 1e-05
        %v507 = vadd.f32 %v491, 1e-05
        %v508 = vadd.f32 %v492, 1e-05
        %v509 = vadd.f32 %v493, 1e-05
        %v510 = vadd.f32 %v494, 1e-05
        %v511 = vadd.f32 %v495, 1e-05
        %v512 = vadd.f32 %v496, 1e-05
        %v513 = vadd.f32 %v497, 1e-05
        %v514 = vadd.f32 %v498, 1e-05
        %v515 = vadd.f32 %v499, 1e-05
        %v516 = vadd.f32 %v500, 1e-05
        %v517 = vadd.f32 %v501, 1e-05
        %v518 = vadd.f32 %v502, 1e-05
        %v519 = vrsqrt.pop %v503
        %v520 = vrsqrt.pop %v504
        %v521 = vrsqrt.pop %v505
        %v522 = vrsqrt.pop %v506
        %v523 = vrsqrt.pop %v507
        %v524 = vrsqrt.pop %v508
        %v525 = vrsqrt.pop %v509
        %v526 = vrsqrt.pop %v510
        %v527 = vrsqrt.pop %v511
        %v528 = vrsqrt.pop %v512
        %v529 = vrsqrt.pop %v513
        %v530 = vrsqrt.pop %v514
        %v531 = vrsqrt.pop %v515
        %v532 = vrsqrt.pop %v516
        %v533 = vrsqrt.pop %v517
        %v534 = vrsqrt.pop %v518
        %v535 = vmul.f32 %v375, %v519
        %v536 = vmul.f32 %v376, %v519
        %v537 = vmul.f32 %v377, %v520
        %v538 = vmul.f32 %v378, %v520
        %v539 = vmul.f32 %v379, %v521
        %v540 = vmul.f32 %v380, %v521
        %v541 = vmul.f32 %v381, %v522
        %v542 = vmul.f32 %v382, %v522
        %v543 = vmul.f32 %v383, %v523
        %v544 = vmul.f32 %v384, %v523
        %v545 = vmul.f32 %v385, %v524
        %v546 = vmul.f32 %v386, %v524
        %v547 = vmul.f32 %v387, %v525
        %v548 = vmul.f32 %v388, %v525
        %v549 = vmul.f32 %v389, %v526
        %v550 = vmul.f32 %v390, %v526
        %v551 = vmul.f32 %v391, %v527
        %v552 = vmul.f32 %v392, %v527
        %v553 = vmul.f32 %v393, %v528
        %v554 = vmul.f32 %v394, %v528
        %v555 = vmul.f32 %v395, %v529
        %v556 = vmul.f32 %v396, %v529
        %v557 = vmul.f32 %v397, %v530
        %v558 = vmul.f32 %v398, %v530
        %v559 = vmul.f32 %v399, %v531
        %v560 = vmul.f32 %v400, %v531
        %v561 = vmul.f32 %v401, %v532
        %v562 = vmul.f32 %v402, %v532
        %v563 = vmul.f32 %v403, %v533
        %v564 = vmul.f32 %v404, %v533
        %v565 = vmul.f32 %v405, %v534
        %v566 = vmul.f32 %v406, %v534
        %v568 = vlaneseq
        %v569 = vshrl.u32 %v568, 7
        %v570 = vsub.s32 0, %v569
        %v571 = vrot.slane %v309, %v570
        %v572 = vlaneseq
        %v573 = vshrl.u32 %v572, 7
        %v574 = vsub.s32 1, %v573
        %v575 = vrot.slane %v309, %v574
        %v578 = vmul.f32 %v535, %v571
        %v579 = vmul.f32 %v536, %v575
        %v580 = vmul.f32 %v537, %v571
        %v581 = vmul.f32 %v538, %v575
        %v582 = vmul.f32 %v539, %v571
        %v583 = vmul.f32 %v540, %v575
        %v584 = vmul.f32 %v541, %v571
        %v585 = vmul.f32 %v542, %v575
        %v586 = vmul.f32 %v543, %v571
        %v587 = vmul.f32 %v544, %v575
        %v588 = vmul.f32 %v545, %v571
        %v589 = vmul.f32 %v546, %v575
        %v590 = vmul.f32 %v547, %v571
        %v591 = vmul.f32 %v548, %v575
        %v592 = vmul.f32 %v549, %v571
        %v593 = vmul.f32 %v550, %v575
        %v594 = vmul.f32 %v551, %v571
        %v595 = vmul.f32 %v552, %v575
        %v596 = vmul.f32 %v553, %v571
        %v597 = vmul.f32 %v554, %v575
        %v598 = vmul.f32 %v555, %v571
        %v599 = vmul.f32 %v556, %v575
        %v600 = vmul.f32 %v557, %v571
        %v601 = vmul.f32 %v558, %v575
        %v602 = vmul.f32 %v559, %v571
        %v603 = vmul.f32 %v560, %v575
        %v604 = vmul.f32 %v561, %v571
        %v605 = vmul.f32 %v562, %v575
        %v606 = vmul.f32 %v563, %v571
        %v607 = vmul.f32 %v564, %v575
        %v608 = vmul.f32 %v565, %v571
        %v609 = vmul.f32 %v566, %v575
        %v610 = vld [vmem:[#allocation7] sm:$0xff]
        %v611 = vld [vmem:[#allocation7 + $0x8] sm:$0xff]
        %v612 = vld [vmem:[#allocation7 + $0x10] sm:$0xff]
        %v613 = vld [vmem:[#allocation7 + $0x18] sm:$0xff]
        %v614 = vld [vmem:[#allocation7 + $0x20] sm:$0xff]
        %v615 = vld [vmem:[#allocation7 + $0x28] sm:$0xff]
        %v616 = vld [vmem:[#allocation7 + $0x30] sm:$0xff]
        %v617 = vld [vmem:[#allocation7 + $0x38] sm:$0xff]
        %v618 = vld [vmem:[#allocation7 + $0x40] sm:$0xff]
        %v619 = vld [vmem:[#allocation7 + $0x48] sm:$0xff]
        %v620 = vld [vmem:[#allocation7 + $0x50] sm:$0xff]
        %v621 = vld [vmem:[#allocation7 + $0x58] sm:$0xff]
        %v622 = vld [vmem:[#allocation7 + $0x60] sm:$0xff]
        %v623 = vld [vmem:[#allocation7 + $0x68] sm:$0xff]
        %v624 = vld [vmem:[#allocation7 + $0x70] sm:$0xff]
        %v625 = vld [vmem:[#allocation7 + $0x78] sm:$0xff]
        %v626 = vld [vmem:[#allocation7 + $0x80] sm:$0xff]
        %v627 = vld [vmem:[#allocation7 + $0x88] sm:$0xff]
        %v628 = vld [vmem:[#allocation7 + $0x90] sm:$0xff]
        %v629 = vld [vmem:[#allocation7 + $0x98] sm:$0xff]
        %v630 = vld [vmem:[#allocation7 + $0xa0] sm:$0xff]
        %v631 = vld [vmem:[#allocation7 + $0xa8] sm:$0xff]
        %v632 = vld [vmem:[#allocation7 + $0xb0] sm:$0xff]
        %v633 = vld [vmem:[#allocation7 + $0xb8] sm:$0xff]
        %v634 = vld [vmem:[#allocation7 + $0xc0] sm:$0xff]
        %v635 = vld [vmem:[#allocation7 + $0xc8] sm:$0xff]
        %v636 = vld [vmem:[#allocation7 + $0xd0] sm:$0xff]
        %v637 = vld [vmem:[#allocation7 + $0xd8] sm:$0xff]
        %v638 = vld [vmem:[#allocation7 + $0xe0] sm:$0xff]
        %v639 = vld [vmem:[#allocation7 + $0xe8] sm:$0xff]
        %v640 = vld [vmem:[#allocation7 + $0xf0] sm:$0xff]
        %v641 = vld [vmem:[#allocation7 + $0xf8] sm:$0xff]
        %v642 = vld [vmem:[#allocation7 + $0x100] sm:$0xff]
        %v643 = vld [vmem:[#allocation7 + $0x108] sm:$0xff]
        %v644 = vld [vmem:[#allocation7 + $0x110] sm:$0xff]
        %v645 = vld [vmem:[#allocation7 + $0x118] sm:$0xff]
        %v646 = vld [vmem:[#allocation7 + $0x120] sm:$0xff]
        %v647 = vld [vmem:[#allocation7 + $0x128] sm:$0xff]
        %v648 = vld [vmem:[#allocation7 + $0x130] sm:$0xff]
        %v649 = vld [vmem:[#allocation7 + $0x138] sm:$0xff]
        %v650 = vld [vmem:[#allocation7 + $0x140] sm:$0xff]
        %v651 = vld [vmem:[#allocation7 + $0x148] sm:$0xff]
        %v652 = vld [vmem:[#allocation7 + $0x150] sm:$0xff]
        %v653 = vld [vmem:[#allocation7 + $0x158] sm:$0xff]
        %v654 = vld [vmem:[#allocation7 + $0x160] sm:$0xff]
        %v655 = vld [vmem:[#allocation7 + $0x168] sm:$0xff]
        %v656 = vld [vmem:[#allocation7 + $0x170] sm:$0xff]
        %v657 = vld [vmem:[#allocation7 + $0x178] sm:$0xff]
        %v658 = vld [vmem:[#allocation7 + $0x180] sm:$0xff]
        %v659 = vld [vmem:[#allocation7 + $0x188] sm:$0xff]
        %v660 = vld [vmem:[#allocation7 + $0x190] sm:$0xff]
        %v661 = vld [vmem:[#allocation7 + $0x198] sm:$0xff]
        %v662 = vld [vmem:[#allocation7 + $0x1a0] sm:$0xff]
        %v663 = vld [vmem:[#allocation7 + $0x1a8] sm:$0xff]
        %v664 = vld [vmem:[#allocation7 + $0x1b0] sm:$0xff]
        %v665 = vld [vmem:[#allocation7 + $0x1b8] sm:$0xff]
        %v666 = vld [vmem:[#allocation7 + $0x1c0] sm:$0xff]
        %v667 = vld [vmem:[#allocation7 + $0x1c8] sm:$0xff]
        %v668 = vld [vmem:[#allocation7 + $0x1d0] sm:$0xff]
        %v669 = vld [vmem:[#allocation7 + $0x1d8] sm:$0xff]
        %v670 = vld [vmem:[#allocation7 + $0x1e0] sm:$0xff]
        %v671 = vld [vmem:[#allocation7 + $0x1e8] sm:$0xff]
        %v672 = vld [vmem:[#allocation7 + $0x1f0] sm:$0xff]
        %v673 = vld [vmem:[#allocation7 + $0x1f8] sm:$0xff]
        %v674 = vld [vmem:[#allocation7 + $0x200] sm:$0xff]
        %v675 = vld [vmem:[#allocation7 + $0x208] sm:$0xff]
        %v676 = vld [vmem:[#allocation7 + $0x210] sm:$0xff]
        %v677 = vld [vmem:[#allocation7 + $0x218] sm:$0xff]
        %v678 = vld [vmem:[#allocation7 + $0x220] sm:$0xff]
        %v679 = vld [vmem:[#allocation7 + $0x228] sm:$0xff]
        %v680 = vld [vmem:[#allocation7 + $0x230] sm:$0xff]
        %v681 = vld [vmem:[#allocation7 + $0x238] sm:$0xff]
        %v682 = vld [vmem:[#allocation7 + $0x240] sm:$0xff]
        %v683 = vld [vmem:[#allocation7 + $0x248] sm:$0xff]
        %v684 = vld [vmem:[#allocation7 + $0x250] sm:$0xff]
        %v685 = vld [vmem:[#allocation7 + $0x258] sm:$0xff]
        %v686 = vld [vmem:[#allocation7 + $0x260] sm:$0xff]
        %v687 = vld [vmem:[#allocation7 + $0x268] sm:$0xff]
        %v688 = vld [vmem:[#allocation7 + $0x270] sm:$0xff]
        %v689 = vld [vmem:[#allocation7 + $0x278] sm:$0xff]
        %v690 = vld [vmem:[#allocation7 + $0x280] sm:$0xff]
        %v691 = vld [vmem:[#allocation7 + $0x288] sm:$0xff]
        %v692 = vld [vmem:[#allocation7 + $0x290] sm:$0xff]
        %v693 = vld [vmem:[#allocation7 + $0x298] sm:$0xff]
        %v694 = vld [vmem:[#allocation7 + $0x2a0] sm:$0xff]
        %v695 = vld [vmem:[#allocation7 + $0x2a8] sm:$0xff]
        %v696 = vld [vmem:[#allocation7 + $0x2b0] sm:$0xff]
        %v697 = vld [vmem:[#allocation7 + $0x2b8] sm:$0xff]
        %v698 = vld [vmem:[#allocation7 + $0x2c0] sm:$0xff]
        %v699 = vld [vmem:[#allocation7 + $0x2c8] sm:$0xff]
        %v700 = vld [vmem:[#allocation7 + $0x2d0] sm:$0xff]
        %v701 = vld [vmem:[#allocation7 + $0x2d8] sm:$0xff]
        %v702 = vld [vmem:[#allocation7 + $0x2e0] sm:$0xff]
        %v703 = vld [vmem:[#allocation7 + $0x2e8] sm:$0xff]
        %v704 = vld [vmem:[#allocation7 + $0x2f0] sm:$0xff]
        %v705 = vld [vmem:[#allocation7 + $0x2f8] sm:$0xff]
        %v706 = vld [vmem:[#allocation7 + $0x300] sm:$0xff]
        %v707 = vld [vmem:[#allocation7 + $0x308] sm:$0xff]
        %v708 = vld [vmem:[#allocation7 + $0x310] sm:$0xff]
        %v709 = vld [vmem:[#allocation7 + $0x318] sm:$0xff]
        %v710 = vld [vmem:[#allocation7 + $0x320] sm:$0xff]
        %v711 = vld [vmem:[#allocation7 + $0x328] sm:$0xff]
        %v712 = vld [vmem:[#allocation7 + $0x330] sm:$0xff]
        %v713 = vld [vmem:[#allocation7 + $0x338] sm:$0xff]
        %v714 = vld [vmem:[#allocation7 + $0x340] sm:$0xff]
        %v715 = vld [vmem:[#allocation7 + $0x348] sm:$0xff]
        %v716 = vld [vmem:[#allocation7 + $0x350] sm:$0xff]
        %v717 = vld [vmem:[#allocation7 + $0x358] sm:$0xff]
        %v718 = vld [vmem:[#allocation7 + $0x360] sm:$0xff]
        %v719 = vld [vmem:[#allocation7 + $0x368] sm:$0xff]
        %v720 = vld [vmem:[#allocation7 + $0x370] sm:$0xff]
        %v721 = vld [vmem:[#allocation7 + $0x378] sm:$0xff]
        %v722 = vld [vmem:[#allocation7 + $0x380] sm:$0xff]
        %v723 = vld [vmem:[#allocation7 + $0x388] sm:$0xff]
        %v724 = vld [vmem:[#allocation7 + $0x390] sm:$0xff]
        %v725 = vld [vmem:[#allocation7 + $0x398] sm:$0xff]
        %v726 = vld [vmem:[#allocation7 + $0x3a0] sm:$0xff]
        %v727 = vld [vmem:[#allocation7 + $0x3a8] sm:$0xff]
        %v728 = vld [vmem:[#allocation7 + $0x3b0] sm:$0xff]
        %v729 = vld [vmem:[#allocation7 + $0x3b8] sm:$0xff]
        %v730 = vld [vmem:[#allocation7 + $0x3c0] sm:$0xff]
        %v731 = vld [vmem:[#allocation7 + $0x3c8] sm:$0xff]
        %v732 = vld [vmem:[#allocation7 + $0x3d0] sm:$0xff]
        %v733 = vld [vmem:[#allocation7 + $0x3d8] sm:$0xff]
        %v734 = vld [vmem:[#allocation7 + $0x3e0] sm:$0xff]
        %v735 = vld [vmem:[#allocation7 + $0x3e8] sm:$0xff]
        %v736 = vld [vmem:[#allocation7 + $0x3f0] sm:$0xff]
        %v737 = vld [vmem:[#allocation7 + $0x3f8] sm:$0xff]
        %v738 = vld [vmem:[#allocation7 + $0x400] sm:$0xff]
        %v739 = vld [vmem:[#allocation7 + $0x408] sm:$0xff]
        %v740 = vld [vmem:[#allocation7 + $0x410] sm:$0xff]
        %v741 = vld [vmem:[#allocation7 + $0x418] sm:$0xff]
        %v742 = vld [vmem:[#allocation7 + $0x420] sm:$0xff]
        %v743 = vld [vmem:[#allocation7 + $0x428] sm:$0xff]
        %v744 = vld [vmem:[#allocation7 + $0x430] sm:$0xff]
        %v745 = vld [vmem:[#allocation7 + $0x438] sm:$0xff]
        %v746 = vld [vmem:[#allocation7 + $0x440] sm:$0xff]
        %v747 = vld [vmem:[#allocation7 + $0x448] sm:$0xff]
        %v748 = vld [vmem:[#allocation7 + $0x450] sm:$0xff]
        %v749 = vld [vmem:[#allocation7 + $0x458] sm:$0xff]
        %v750 = vld [vmem:[#allocation7 + $0x460] sm:$0xff]
        %v751 = vld [vmem:[#allocation7 + $0x468] sm:$0xff]
        %v752 = vld [vmem:[#allocation7 + $0x470] sm:$0xff]
        %v753 = vld [vmem:[#allocation7 + $0x478] sm:$0xff]
        %v754 = vld [vmem:[#allocation7 + $0x480] sm:$0xff]
        %v755 = vld [vmem:[#allocation7 + $0x488] sm:$0xff]
        %v756 = vld [vmem:[#allocation7 + $0x490] sm:$0xff]
        %v757 = vld [vmem:[#allocation7 + $0x498] sm:$0xff]
        %v758 = vld [vmem:[#allocation7 + $0x4a0] sm:$0xff]
        %v759 = vld [vmem:[#allocation7 + $0x4a8] sm:$0xff]
        %v760 = vld [vmem:[#allocation7 + $0x4b0] sm:$0xff]
        %v761 = vld [vmem:[#allocation7 + $0x4b8] sm:$0xff]
        %v762 = vld [vmem:[#allocation7 + $0x4c0] sm:$0xff]
        %v763 = vld [vmem:[#allocation7 + $0x4c8] sm:$0xff]
        %v764 = vld [vmem:[#allocation7 + $0x4d0] sm:$0xff]
        %v765 = vld [vmem:[#allocation7 + $0x4d8] sm:$0xff]
        %v766 = vld [vmem:[#allocation7 + $0x4e0] sm:$0xff]
        %v767 = vld [vmem:[#allocation7 + $0x4e8] sm:$0xff]
        %v768 = vld [vmem:[#allocation7 + $0x4f0] sm:$0xff]
        %v769 = vld [vmem:[#allocation7 + $0x4f8] sm:$0xff]
        %v770 = vld [vmem:[#allocation7 + $0x500] sm:$0xff]
        %v771 = vld [vmem:[#allocation7 + $0x508] sm:$0xff]
        %v772 = vld [vmem:[#allocation7 + $0x510] sm:$0xff]
        %v773 = vld [vmem:[#allocation7 + $0x518] sm:$0xff]
        %v774 = vld [vmem:[#allocation7 + $0x520] sm:$0xff]
        %v775 = vld [vmem:[#allocation7 + $0x528] sm:$0xff]
        %v776 = vld [vmem:[#allocation7 + $0x530] sm:$0xff]
        %v777 = vld [vmem:[#allocation7 + $0x538] sm:$0xff]
        %v778 = vld [vmem:[#allocation7 + $0x540] sm:$0xff]
        %v779 = vld [vmem:[#allocation7 + $0x548] sm:$0xff]
        %v780 = vld [vmem:[#allocation7 + $0x550] sm:$0xff]
        %v781 = vld [vmem:[#allocation7 + $0x558] sm:$0xff]
        %v782 = vld [vmem:[#allocation7 + $0x560] sm:$0xff]
        %v783 = vld [vmem:[#allocation7 + $0x568] sm:$0xff]
        %v784 = vld [vmem:[#allocation7 + $0x570] sm:$0xff]
        %v785 = vld [vmem:[#allocation7 + $0x578] sm:$0xff]
        %v786 = vld [vmem:[#allocation7 + $0x580] sm:$0xff]
        %v787 = vld [vmem:[#allocation7 + $0x588] sm:$0xff]
        %v788 = vld [vmem:[#allocation7 + $0x590] sm:$0xff]
        %v789 = vld [vmem:[#allocation7 + $0x598] sm:$0xff]
        %v790 = vld [vmem:[#allocation7 + $0x5a0] sm:$0xff]
        %v791 = vld [vmem:[#allocation7 + $0x5a8] sm:$0xff]
        %v792 = vld [vmem:[#allocation7 + $0x5b0] sm:$0xff]
        %v793 = vld [vmem:[#allocation7 + $0x5b8] sm:$0xff]
        %v794 = vld [vmem:[#allocation7 + $0x5c0] sm:$0xff]
        %v795 = vld [vmem:[#allocation7 + $0x5c8] sm:$0xff]
        %v796 = vld [vmem:[#allocation7 + $0x5d0] sm:$0xff]
        %v797 = vld [vmem:[#allocation7 + $0x5d8] sm:$0xff]
        %v798 = vld [vmem:[#allocation7 + $0x5e0] sm:$0xff]
        %v799 = vld [vmem:[#allocation7 + $0x5e8] sm:$0xff]
        %v800 = vld [vmem:[#allocation7 + $0x5f0] sm:$0xff]
        %v801 = vld [vmem:[#allocation7 + $0x5f8] sm:$0xff]
        %v802 = vld [vmem:[#allocation8] sm:$0x3f]
        %v804 = vlaneseq
        %v805 = vshrl.u32 %v804, 7
        %v806 = vsub.s32 0, %v805
        %v807 = vrot.slane %v802, %v806
        %v808 = vlaneseq
        %v809 = vshrl.u32 %v808, 7
        %v810 = vsub.s32 1, %v809
        %v811 = vrot.slane %v802, %v810
        %v812 = vlaneseq
        %v813 = vshrl.u32 %v812, 7
        %v814 = vsub.s32 2, %v813
        %v815 = vrot.slane %v802, %v814
        %v816 = vlaneseq
        %v817 = vshrl.u32 %v816, 7
        %v818 = vsub.s32 3, %v817
        %v819 = vrot.slane %v802, %v818
        %v820 = vlaneseq
        %v821 = vshrl.u32 %v820, 7
        %v822 = vsub.s32 4, %v821
        %v823 = vrot.slane %v802, %v822
        %v824 = vlaneseq
        %v825 = vshrl.u32 %v824, 7
        %v826 = vsub.s32 5, %v825
        %v827 = vrot.slane %v802, %v826
        %834 = vmatprep.subr.mxu0 %v611
        %835 = vmatpush1.msra.mxu0 %v610
        %836 = vmatprep.subr.mxu0 %v617
        %837 = vmatpush1.msra.mxu0 %v616
        %838 = vmatprep.subr.mxu0 %v623
        %839 = vmatpush1.msra.mxu0 %v622
        %840 = vmatprep.subr.mxu0 %v629
        %841 = vmatpush1.msra.mxu0 %v628
        %842 = vmatprep.subr.mxu0 %v635
        %843 = vmatpush1.msra.mxu0 %v634
        %844 = vmatprep.subr.mxu0 %v641
        %845 = vmatpush1.msra.mxu0 %v640
        %846 = vmatprep.subr.mxu0 %v647
        %847 = vmatpush1.msra.mxu0 %v646
        %848 = vmatprep.subr.mxu0 %v653
        %849 = vmatpush1.msra.mxu0 %v652
        %850 = vmatprep.subr.mxu0 %v659
        %851 = vmatpush1.msra.mxu0 %v658
        %852 = vmatprep.subr.mxu0 %v665
        %853 = vmatpush1.msra.mxu0 %v664
        %854 = vmatprep.subr.mxu0 %v671
        %855 = vmatpush1.msra.mxu0 %v670
        %856 = vmatprep.subr.mxu0 %v677
        %857 = vmatpush1.msra.mxu0 %v676
        %858 = vmatprep.subr.mxu0 %v683
        %859 = vmatpush1.msra.mxu0 %v682
        %860 = vmatprep.subr.mxu0 %v689
        %861 = vmatpush1.msra.mxu0 %v688
        %862 = vmatprep.subr.mxu0 %v695
        %863 = vmatpush1.msra.mxu0 %v694
        %864 = vmatprep.subr.mxu0 %v701
        %865 = vmatpush1.msra.mxu0 %v700
        %866 = vmatprep.subr.mxu0 %v707
        %867 = vmatpush1.msra.mxu0 %v706
        %868 = vmatprep.subr.mxu0 %v713
        %869 = vmatpush1.msra.mxu0 %v712
        %870 = vmatprep.subr.mxu0 %v719
        %871 = vmatpush1.msra.mxu0 %v718
        %872 = vmatprep.subr.mxu0 %v725
        %873 = vmatpush1.msra.mxu0 %v724
        %874 = vmatprep.subr.mxu0 %v731
        %875 = vmatpush1.msra.mxu0 %v730
        %876 = vmatprep.subr.mxu0 %v737
        %877 = vmatpush1.msra.mxu0 %v736
        %878 = vmatprep.subr.mxu0 %v743
        %879 = vmatpush1.msra.mxu0 %v742
        %880 = vmatprep.subr.mxu0 %v749
        %881 = vmatpush1.msra.mxu0 %v748
        %882 = vmatprep.subr.mxu0 %v755
        %883 = vmatpush1.msra.mxu0 %v754
        %884 = vmatprep.subr.mxu0 %v761
        %885 = vmatpush1.msra.mxu0 %v760
        %886 = vmatprep.subr.mxu0 %v767
        %887 = vmatpush1.msra.mxu0 %v766
        %888 = vmatprep.subr.mxu0 %v773
        %889 = vmatpush1.msra.mxu0 %v772
        %890 = vmatprep.subr.mxu0 %v779
        %891 = vmatpush1.msra.mxu0 %v778
        %892 = vmatprep.subr.mxu0 %v785
        %893 = vmatpush1.msra.mxu0 %v784
        %894 = vmatprep.subr.mxu0 %v791
        %895 = vmatpush1.msra.mxu0 %v790
        %896 = vmatprep.subr.mxu0 %v797
        %897 = vmatpush1.msra.mxu0 %v796
        %898 = vmatprep.mubr.f32.mxu0 %v579
        %899 = vmatmul.mubr.f32.gmra.mrb[0].mxu0 %v578
        %v900 = vpop.f32.mrb[0].mxu0
        %v901 = vadd.f32 %v807, %v900
        %v902 = vpop.f32.mrb[0].mxu0
        %v903 = vadd.f32 %v811, %v902
        %904 = vmatprep.mubr.f32.mxu0 %v581
        %905 = vmatmul.mubr.f32.gmra.mrb[0].mxu0 %v580
        %v906 = vpop.f32.mrb[0].mxu0
        %v907 = vadd.f32 %v807, %v906
        %v908 = vpop.f32.mrb[0].mxu0
        %v909 = vadd.f32 %v811, %v908
        %910 = vmatprep.mubr.f32.mxu0 %v583
        %911 = vmatmul.mubr.f32.gmra.mrb[0].mxu0 %v582
        %v912 = vpop.f32.mrb[0].mxu0
        %v913 = vadd.f32 %v807, %v912
        %v914 = vpop.f32.mrb[0].mxu0
        %v915 = vadd.f32 %v811, %v914
        %916 = vmatprep.mubr.f32.mxu0 %v585
        %917 = vmatmul.mubr.f32.gmra.mrb[0].mxu0 %v584
        %v918 = vpop.f32.mrb[0].mxu0
        %v919 = vadd.f32 %v807, %v918
        %v920 = vpop.f32.mrb[0].mxu0
        %v921 = vadd.f32 %v811, %v920
        %922 = vmatprep.mubr.f32.mxu0 %v587
        %923 = vmatmul.mubr.f32.gmra.mrb[0].mxu0 %v586
        %v924 = vpop.f32.mrb[0].mxu0
        %v925 = vadd.f32 %v807, %v924
        %v926 = vpop.f32.mrb[0].mxu0
        %v927 = vadd.f32 %v811, %v926
        %928 = vmatprep.mubr.f32.mxu0 %v589
        %929 = vmatmul.mubr.f32.gmra.mrb[0].mxu0 %v588
        %v930 = vpop.f32.mrb[0].mxu0
        %v931 = vadd.f32 %v807, %v930
        %v932 = vpop.f32.mrb[0].mxu0
        %v933 = vadd.f32 %v811, %v932
        %934 = vmatprep.mubr.f32.mxu0 %v591
        %935 = vmatmul.mubr.f32.gmra.mrb[0].mxu0 %v590
        %v936 = vpop.f32.mrb[0].mxu0
        %v937 = vadd.f32 %v807, %v936
        %v938 = vpop.f32.mrb[0].mxu0
        %v939 = vadd.f32 %v811, %v938
        %940 = vmatprep.mubr.f32.mxu0 %v593
        %941 = vmatmul.mubr.f32.gmra.mrb[0].mxu0 %v592
        %v942 = vpop.f32.mrb[0].mxu0
        %v943 = vadd.f32 %v807, %v942
        %v944 = vpop.f32.mrb[0].mxu0
        %v945 = vadd.f32 %v811, %v944
        %946 = vmatprep.mubr.f32.mxu0 %v595
        %947 = vmatmul.mubr.f32.gmra.mrb[0].mxu0 %v594
        %v948 = vpop.f32.mrb[0].mxu0
        %v949 = vadd.f32 %v807, %v948
        %v950 = vpop.f32.mrb[0].mxu0
        %v951 = vadd.f32 %v811, %v950
        %952 = vmatprep.mubr.f32.mxu0 %v597
        %953 = vmatmul.mubr.f32.gmra.mrb[0].mxu0 %v596
        %v954 = vpop.f32.mrb[0].mxu0
        %v955 = vadd.f32 %v807, %v954
        %v956 = vpop.f32.mrb[0].mxu0
        %v957 = vadd.f32 %v811, %v956
        %958 = vmatprep.mubr.f32.mxu0 %v599
        %959 = vmatmul.mubr.f32.gmra.mrb[0].mxu0 %v598
        %v960 = vpop.f32.mrb[0].mxu0
        %v961 = vadd.f32 %v807, %v960
        %v962 = vpop.f32.mrb[0].mxu0
        %v963 = vadd.f32 %v811, %v962
        %964 = vmatprep.mubr.f32.mxu0 %v601
        %965 = vmatmul.mubr.f32.gmra.mrb[0].mxu0 %v600
        %v966 = vpop.f32.mrb[0].mxu0
        %v967 = vadd.f32 %v807, %v966
        %v968 = vpop.f32.mrb[0].mxu0
        %v969 = vadd.f32 %v811, %v968
        %970 = vmatprep.mubr.f32.mxu0 %v603
        %971 = vmatmul.mubr.f32.gmra.mrb[0].mxu0 %v602
        %v972 = vpop.f32.mrb[0].mxu0
        %v973 = vadd.f32 %v807, %v972
        %v974 = vpop.f32.mrb[0].mxu0
        %v975 = vadd.f32 %v811, %v974
        %976 = vmatprep.mubr.f32.mxu0 %v605
        %977 = vmatmul.mubr.f32.gmra.mrb[0].mxu0 %v604
        %v978 = vpop.f32.mrb[0].mxu0
        %v979 = vadd.f32 %v807, %v978
        %v980 = vpop.f32.mrb[0].mxu0
        %v981 = vadd.f32 %v811, %v980
        %982 = vmatprep.mubr.f32.mxu0 %v607
        %983 = vmatmul.mubr.f32.gmra.mrb[0].mxu0 %v606
        %v984 = vpop.f32.mrb[0].mxu0
        %v985 = vadd.f32 %v807, %v984
        %v986 = vpop.f32.mrb[0].mxu0
        %v987 = vadd.f32 %v811, %v986
        %988 = vmatprep.mubr.f32.mxu0 %v609
        %989 = vmatmul.mubr.f32.gmra.mrb[0].mxu0 %v608
        %v990 = vpop.f32.mrb[0].mxu0
        %v991 = vadd.f32 %v807, %v990
        %v992 = vpop.f32.mrb[0].mxu0
        %v993 = vadd.f32 %v811, %v992
        %994 = vdwg.mxu0
        %995 = vmatprep.subr.mxu0 %v613
        %996 = vmatpush1.msra.mxu0 %v612
        %997 = vmatprep.subr.mxu0 %v619
        %998 = vmatpush1.msra.mxu0 %v618
        %999 = vmatprep.subr.mxu0 %v625
        %1000 = vmatpush1.msra.mxu0 %v624
        %1001 = vmatprep.subr.mxu0 %v631
        %1002 = vmatpush1.msra.mxu0 %v630
        %1003 = vmatprep.subr.mxu0 %v637
        %1004 = vmatpush1.msra.mxu0 %v636
        %1005 = vmatprep.subr.mxu0 %v643
        %1006 = vmatpush1.msra.mxu0 %v642
        %1007 = vmatprep.subr.mxu0 %v649
        %1008 = vmatpush1.msra.mxu0 %v648
        %1009 = vmatprep.subr.mxu0 %v655
        %1010 = vmatpush1.msra.mxu0 %v654
        %1011 = vmatprep.subr.mxu0 %v661
        %1012 = vmatpush1.msra.mxu0 %v660
        %1013 = vmatprep.subr.mxu0 %v667
        %1014 = vmatpush1.msra.mxu0 %v666
        %1015 = vmatprep.subr.mxu0 %v673
        %1016 = vmatpush1.msra.mxu0 %v672
        %1017 = vmatprep.subr.mxu0 %v679
        %1018 = vmatpush1.msra.mxu0 %v678
        %1019 = vmatprep.subr.mxu0 %v685
        %1020 = vmatpush1.msra.mxu0 %v684
        %1021 = vmatprep.subr.mxu0 %v691
        %1022 = vmatpush1.msra.mxu0 %v690
        %1023 = vmatprep.subr.mxu0 %v697
        %1024 = vmatpush1.msra.mxu0 %v696
        %1025 = vmatprep.subr.mxu0 %v703
        %1026 = vmatpush1.msra.mxu0 %v702
        %1027 = vmatprep.subr.mxu0 %v709
        %1028 = vmatpush1.msra.mxu0 %v708
        %1029 = vmatprep.subr.mxu0 %v715
        %1030 = vmatpush1.msra.mxu0 %v714
        %1031 = vmatprep.subr.mxu0 %v721
        %1032 = vmatpush1.msra.mxu0 %v720
        %1033 = vmatprep.subr.mxu0 %v727
        %1034 = vmatpush1.msra.mxu0 %v726
        %1035 = vmatprep.subr.mxu0 %v733
        %1036 = vmatpush1.msra.mxu0 %v732
        %1037 = vmatprep.subr.mxu0 %v739
        %1038 = vmatpush1.msra.mxu0 %v738
        %1039 = vmatprep.subr.mxu0 %v745
        %1040 = vmatpush1.msra.mxu0 %v744
        %1041 = vmatprep.subr.mxu0 %v751
        %1042 = vmatpush1.msra.mxu0 %v750
        %1043 = vmatprep.subr.mxu0 %v757
        %1044 = vmatpush1.msra.mxu0 %v756
        %1045 = vmatprep.subr.mxu0 %v763
        %1046 = vmatpush1.msra.mxu0 %v762
        %1047 = vmatprep.subr.mxu0 %v769
        %1048 = vmatpush1.msra.mxu0 %v768
        %1049 = vmatprep.subr.mxu0 %v775
        %1050 = vmatpush1.msra.mxu0 %v774
        %1051 = vmatprep.subr.mxu0 %v781
        %1052 = vmatpush1.msra.mxu0 %v780
        %1053 = vmatprep.subr.mxu0 %v787
        %1054 = vmatpush1.msra.mxu0 %v786
        %1055 = vmatprep.subr.mxu0 %v793
        %1056 = vmatpush1.msra.mxu0 %v792
        %1057 = vmatprep.subr.mxu0 %v799
        %1058 = vmatpush1.msra.mxu0 %v798
        %1059 = vmatprep.mubr.f32.mxu0 %v579
        %1060 = vmatmul.mubr.f32.gmra.mrb[0].mxu0 %v578
        %v1061 = vpop.f32.mrb[0].mxu0
        %v1062 = vadd.f32 %v815, %v1061
        %v1063 = vpop.f32.mrb[0].mxu0
        %v1064 = vadd.f32 %v819, %v1063
        %1065 = vmatprep.mubr.f32.mxu0 %v581
        %1066 = vmatmul.mubr.f32.gmra.mrb[0].mxu0 %v580
        %v1067 = vpop.f32.mrb[0].mxu0
        %v1068 = vadd.f32 %v815, %v1067
        %v1069 = vpop.f32.mrb[0].mxu0
        %v1070 = vadd.f32 %v819, %v1069
        %1071 = vmatprep.mubr.f32.mxu0 %v583
        %1072 = vmatmul.mubr.f32.gmra.mrb[0].mxu0 %v582
        %v1073 = vpop.f32.mrb[0].mxu0
        %v1074 = vadd.f32 %v815, %v1073
        %v1075 = vpop.f32.mrb[0].mxu0
        %v1076 = vadd.f32 %v819, %v1075
        %1077 = vmatprep.mubr.f32.mxu0 %v585
        %1078 = vmatmul.mubr.f32.gmra.mrb[0].mxu0 %v584
        %v1079 = vpop.f32.mrb[0].mxu0
        %v1080 = vadd.f32 %v815, %v1079
        %v1081 = vpop.f32.mrb[0].mxu0
        %v1082 = vadd.f32 %v819, %v1081
        %1083 = vmatprep.mubr.f32.mxu0 %v587
        %1084 = vmatmul.mubr.f32.gmra.mrb[0].mxu0 %v586
        %v1085 = vpop.f32.mrb[0].mxu0
        %v1086 = vadd.f32 %v815, %v1085
        %v1087 = vpop.f32.mrb[0].mxu0
        %v1088 = vadd.f32 %v819, %v1087
        %1089 = vmatprep.mubr.f32.mxu0 %v589
        %1090 = vmatmul.mubr.f32.gmra.mrb[0].mxu0 %v588
        %v1091 = vpop.f32.mrb[0].mxu0
        %v1092 = vadd.f32 %v815, %v1091
        %v1093 = vpop.f32.mrb[0].mxu0
        %v1094 = vadd.f32 %v819, %v1093
        %1095 = vmatprep.mubr.f32.mxu0 %v591
        %1096 = vmatmul.mubr.f32.gmra.mrb[0].mxu0 %v590
        %v1097 = vpop.f32.mrb[0].mxu0
        %v1098 = vadd.f32 %v815, %v1097
        %v1099 = vpop.f32.mrb[0].mxu0
        %v1100 = vadd.f32 %v819, %v1099
        %1101 = vmatprep.mubr.f32.mxu0 %v593
        %1102 = vmatmul.mubr.f32.gmra.mrb[0].mxu0 %v592
        %v1103 = vpop.f32.mrb[0].mxu0
        %v1104 = vadd.f32 %v815, %v1103
        %v1105 = vpop.f32.mrb[0].mxu0
        %v1106 = vadd.f32 %v819, %v1105
        %1107 = vmatprep.mubr.f32.mxu0 %v595
        %1108 = vmatmul.mubr.f32.gmra.mrb[0].mxu0 %v594
        %v1109 = vpop.f32.mrb[0].mxu0
        %v1110 = vadd.f32 %v815, %v1109
        %v1111 = vpop.f32.mrb[0].mxu0
        %v1112 = vadd.f32 %v819, %v1111
        %1113 = vmatprep.mubr.f32.mxu0 %v597
        %1114 = vmatmul.mubr.f32.gmra.mrb[0].mxu0 %v596
        %v1115 = vpop.f32.mrb[0].mxu0
        %v1116 = vadd.f32 %v815, %v1115
        %v1117 = vpop.f32.mrb[0].mxu0
        %v1118 = vadd.f32 %v819, %v1117
        %1119 = vmatprep.mubr.f32.mxu0 %v599
        %1120 = vmatmul.mubr.f32.gmra.mrb[0].mxu0 %v598
        %v1121 = vpop.f32.mrb[0].mxu0
        %v1122 = vadd.f32 %v815, %v1121
        %v1123 = vpop.f32.mrb[0].mxu0
        %v1124 = vadd.f32 %v819, %v1123
        %1125 = vmatprep.mubr.f32.mxu0 %v601
        %1126 = vmatmul.mubr.f32.gmra.mrb[0].mxu0 %v600
        %v1127 = vpop.f32.mrb[0].mxu0
        %v1128 = vadd.f32 %v815, %v1127
        %v1129 = vpop.f32.mrb[0].mxu0
        %v1130 = vadd.f32 %v819, %v1129
        %1131 = vmatprep.mubr.f32.mxu0 %v603
        %1132 = vmatmul.mubr.f32.gmra.mrb[0].mxu0 %v602
        %v1133 = vpop.f32.mrb[0].mxu0
        %v1134 = vadd.f32 %v815, %v1133
        %v1135 = vpop.f32.mrb[0].mxu0
        %v1136 = vadd.f32 %v819, %v1135
        %1137 = vmatprep.mubr.f32.mxu0 %v605
        %1138 = vmatmul.mubr.f32.gmra.mrb[0].mxu0 %v604
        %v1139 = vpop.f32.mrb[0].mxu0
        %v1140 = vadd.f32 %v815, %v1139
        %v1141 = vpop.f32.mrb[0].mxu0
        %v1142 = vadd.f32 %v819, %v1141
        %1143 = vmatprep.mubr.f32.mxu0 %v607
        %1144 = vmatmul.mubr.f32.gmra.mrb[0].mxu0 %v606
        %v1145 = vpop.f32.mrb[0].mxu0
        %v1146 = vadd.f32 %v815, %v1145
        %v1147 = vpop.f32.mrb[0].mxu0
        %v1148 = vadd.f32 %v819, %v1147
        %1149 = vmatprep.mubr.f32.mxu0 %v609
        %1150 = vmatmul.mubr.f32.gmra.mrb[0].mxu0 %v608
        %v1151 = vpop.f32.mrb[0].mxu0
        %v1152 = vadd.f32 %v815, %v1151
        %v1153 = vpop.f32.mrb[0].mxu0
        %v1154 = vadd.f32 %v819, %v1153
        %1155 = vdwg.mxu0
        %1156 = vmatprep.subr.mxu0 %v615
        %1157 = vmatpush1.msra.mxu0 %v614
        %1158 = vmatprep.subr.mxu0 %v621
        %1159 = vmatpush1.msra.mxu0 %v620
        %1160 = vmatprep.subr.mxu0 %v627
        %1161 = vmatpush1.msra.mxu0 %v626
        %1162 = vmatprep.subr.mxu0 %v633
        %1163 = vmatpush1.msra.mxu0 %v632
        %1164 = vmatprep.subr.mxu0 %v639
        %1165 = vmatpush1.msra.mxu0 %v638
        %1166 = vmatprep.subr.mxu0 %v645
        %1167 = vmatpush1.msra.mxu0 %v644
        %1168 = vmatprep.subr.mxu0 %v651
        %1169 = vmatpush1.msra.mxu0 %v650
        %1170 = vmatprep.subr.mxu0 %v657
        %1171 = vmatpush1.msra.mxu0 %v656
        %1172 = vmatprep.subr.mxu0 %v663
        %1173 = vmatpush1.msra.mxu0 %v662
        %1174 = vmatprep.subr.mxu0 %v669
        %1175 = vmatpush1.msra.mxu0 %v668
        %1176 = vmatprep.subr.mxu0 %v675
        %1177 = vmatpush1.msra.mxu0 %v674
        %1178 = vmatprep.subr.mxu0 %v681
        %1179 = vmatpush1.msra.mxu0 %v680
        %1180 = vmatprep.subr.mxu0 %v687
        %1181 = vmatpush1.msra.mxu0 %v686
        %1182 = vmatprep.subr.mxu0 %v693
        %1183 = vmatpush1.msra.mxu0 %v692
        %1184 = vmatprep.subr.mxu0 %v699
        %1185 = vmatpush1.msra.mxu0 %v698
        %1186 = vmatprep.subr.mxu0 %v705
        %1187 = vmatpush1.msra.mxu0 %v704
        %1188 = vmatprep.subr.mxu0 %v711
        %1189 = vmatpush1.msra.mxu0 %v710
        %1190 = vmatprep.subr.mxu0 %v717
        %1191 = vmatpush1.msra.mxu0 %v716
        %1192 = vmatprep.subr.mxu0 %v723
        %1193 = vmatpush1.msra.mxu0 %v722
        %1194 = vmatprep.subr.mxu0 %v729
        %1195 = vmatpush1.msra.mxu0 %v728
        %1196 = vmatprep.subr.mxu0 %v735
        %1197 = vmatpush1.msra.mxu0 %v734
        %1198 = vmatprep.subr.mxu0 %v741
        %1199 = vmatpush1.msra.mxu0 %v740
        %1200 = vmatprep.subr.mxu0 %v747
        %1201 = vmatpush1.msra.mxu0 %v746
        %1202 = vmatprep.subr.mxu0 %v753
        %1203 = vmatpush1.msra.mxu0 %v752
        %1204 = vmatprep.subr.mxu0 %v759
        %1205 = vmatpush1.msra.mxu0 %v758
        %1206 = vmatprep.subr.mxu0 %v765
        %1207 = vmatpush1.msra.mxu0 %v764
        %1208 = vmatprep.subr.mxu0 %v771
        %1209 = vmatpush1.msra.mxu0 %v770
        %1210 = vmatprep.subr.mxu0 %v777
        %1211 = vmatpush1.msra.mxu0 %v776
        %1212 = vmatprep.subr.mxu0 %v783
        %1213 = vmatpush1.msra.mxu0 %v782
        %1214 = vmatprep.subr.mxu0 %v789
        %1215 = vmatpush1.msra.mxu0 %v788
        %1216 = vmatprep.subr.mxu0 %v795
        %1217 = vmatpush1.msra.mxu0 %v794
        %1218 = vmatprep.subr.mxu0 %v801
        %1219 = vmatpush1.msra.mxu0 %v800
        %1220 = vmatprep.mubr.f32.mxu0 %v579
        %1221 = vmatmul.mubr.f32.gmra.mrb[0].mxu0 %v578
        %v1222 = vpop.f32.mrb[0].mxu0
        %v1223 = vadd.f32 %v823, %v1222
        %v1224 = vpop.f32.mrb[0].mxu0
        %v1225 = vadd.f32 %v827, %v1224
        %1226 = vmatprep.mubr.f32.mxu0 %v581
        %1227 = vmatmul.mubr.f32.gmra.mrb[0].mxu0 %v580
        %v1228 = vpop.f32.mrb[0].mxu0
        %v1229 = vadd.f32 %v823, %v1228
        %v1230 = vpop.f32.mrb[0].mxu0
        %v1231 = vadd.f32 %v827, %v1230
        %1232 = vmatprep.mubr.f32.mxu0 %v583
        %1233 = vmatmul.mubr.f32.gmra.mrb[0].mxu0 %v582
        %v1234 = vpop.f32.mrb[0].mxu0
        %v1235 = vadd.f32 %v823, %v1234
        %v1236 = vpop.f32.mrb[0].mxu0
        %v1237 = vadd.f32 %v827, %v1236
        %1238 = vmatprep.mubr.f32.mxu0 %v585
        %1239 = vmatmul.mubr.f32.gmra.mrb[0].mxu0 %v584
        %v1240 = vpop.f32.mrb[0].mxu0
        %v1241 = vadd.f32 %v823, %v1240
        %v1242 = vpop.f32.mrb[0].mxu0
        %v1243 = vadd.f32 %v827, %v1242
        %1244 = vmatprep.mubr.f32.mxu0 %v587
        %1245 = vmatmul.mubr.f32.gmra.mrb[0].mxu0 %v586
        %v1246 = vpop.f32.mrb[0].mxu0
        %v1247 = vadd.f32 %v823, %v1246
        %v1248 = vpop.f32.mrb[0].mxu0
        %v1249 = vadd.f32 %v827, %v1248
        %1250 = vmatprep.mubr.f32.mxu0 %v589
        %1251 = vmatmul.mubr.f32.gmra.mrb[0].mxu0 %v588
        %v1252 = vpop.f32.mrb[0].mxu0
        %v1253 = vadd.f32 %v823, %v1252
        %v1254 = vpop.f32.mrb[0].mxu0
        %v1255 = vadd.f32 %v827, %v1254
        %1256 = vmatprep.mubr.f32.mxu0 %v591
        %1257 = vmatmul.mubr.f32.gmra.mrb[0].mxu0 %v590
        %v1258 = vpop.f32.mrb[0].mxu0
        %v1259 = vadd.f32 %v823, %v1258
        %v1260 = vpop.f32.mrb[0].mxu0
        %v1261 = vadd.f32 %v827, %v1260
        %1262 = vmatprep.mubr.f32.mxu0 %v593
        %1263 = vmatmul.mubr.f32.gmra.mrb[0].mxu0 %v592
        %v1264 = vpop.f32.mrb[0].mxu0
        %v1265 = vadd.f32 %v823, %v1264
        %v1266 = vpop.f32.mrb[0].mxu0
        %v1267 = vadd.f32 %v827, %v1266
        %1268 = vmatprep.mubr.f32.mxu0 %v595
        %1269 = vmatmul.mubr.f32.gmra.mrb[0].mxu0 %v594
        %v1270 = vpop.f32.mrb[0].mxu0
        %v1271 = vadd.f32 %v823, %v1270
        %v1272 = vpop.f32.mrb[0].mxu0
        %v1273 = vadd.f32 %v827, %v1272
        %1274 = vmatprep.mubr.f32.mxu0 %v597
        %1275 = vmatmul.mubr.f32.gmra.mrb[0].mxu0 %v596
        %v1276 = vpop.f32.mrb[0].mxu0
        %v1277 = vadd.f32 %v823, %v1276
        %v1278 = vpop.f32.mrb[0].mxu0
        %v1279 = vadd.f32 %v827, %v1278
        %1280 = vmatprep.mubr.f32.mxu0 %v599
        %1281 = vmatmul.mubr.f32.gmra.mrb[0].mxu0 %v598
        %v1282 = vpop.f32.mrb[0].mxu0
        %v1283 = vadd.f32 %v823, %v1282
        %v1284 = vpop.f32.mrb[0].mxu0
        %v1285 = vadd.f32 %v827, %v1284
        %1286 = vmatprep.mubr.f32.mxu0 %v601
        %1287 = vmatmul.mubr.f32.gmra.mrb[0].mxu0 %v600
        %v1288 = vpop.f32.mrb[0].mxu0
        %v1289 = vadd.f32 %v823, %v1288
        %v1290 = vpop.f32.mrb[0].mxu0
        %v1291 = vadd.f32 %v827, %v1290
        %1292 = vmatprep.mubr.f32.mxu0 %v603
        %1293 = vmatmul.mubr.f32.gmra.mrb[0].mxu0 %v602
        %v1294 = vpop.f32.mrb[0].mxu0
        %v1295 = vadd.f32 %v823, %v1294
        %v1296 = vpop.f32.mrb[0].mxu0
        %v1297 = vadd.f32 %v827, %v1296
        %1298 = vmatprep.mubr.f32.mxu0 %v605
        %1299 = vmatmul.mubr.f32.gmra.mrb[0].mxu0 %v604
        %v1300 = vpop.f32.mrb[0].mxu0
        %v1301 = vadd.f32 %v823, %v1300
        %v1302 = vpop.f32.mrb[0].mxu0
        %v1303 = vadd.f32 %v827, %v1302
        %1304 = vmatprep.mubr.f32.mxu0 %v607
        %1305 = vmatmul.mubr.f32.gmra.mrb[0].mxu0 %v606
        %v1306 = vpop.f32.mrb[0].mxu0
        %v1307 = vadd.f32 %v823, %v1306
        %v1308 = vpop.f32.mrb[0].mxu0
        %v1309 = vadd.f32 %v827, %v1308
        %1310 = vmatprep.mubr.f32.mxu0 %v609
        %1311 = vmatmul.mubr.f32.gmra.mrb[0].mxu0 %v608
        %v1312 = vpop.f32.mrb[0].mxu0
        %v1313 = vadd.f32 %v823, %v1312
        %v1314 = vpop.f32.mrb[0].mxu0
        %v1315 = vadd.f32 %v827, %v1314
        %1316 = vdwg.mxu0
        %1317 = vst [vmem:[%s274] sm:$0xff] %v901
        %1318 = vst [vmem:[%s274 + $0x8] sm:$0xff] %v903
        %1319 = vst [vmem:[%s274 + $0x10] sm:$0xff] %v1062
        %1320 = vst [vmem:[%s274 + $0x18] sm:$0xff] %v1064
        %1321 = vst [vmem:[%s274 + $0x20] sm:$0xff] %v1223
        %1322 = vst [vmem:[%s274 + $0x28] sm:$0xff] %v1225
        %1323 = vst [vmem:[%s274 + $0x30] sm:$0xff] %v907
        %1324 = vst [vmem:[%s274 + $0x38] sm:$0xff] %v909
        %1325 = vst [vmem:[%s274 + $0x40] sm:$0xff] %v1068
        %1326 = vst [vmem:[%s274 + $0x48] sm:$0xff] %v1070
        %1327 = vst [vmem:[%s274 + $0x50] sm:$0xff] %v1229
        %1328 = vst [vmem:[%s274 + $0x58] sm:$0xff] %v1231
        %1329 = vst [vmem:[%s274 + $0x60] sm:$0xff] %v913
        %1330 = vst [vmem:[%s274 + $0x68] sm:$0xff] %v915
        %1331 = vst [vmem:[%s274 + $0x70] sm:$0xff] %v1074
        %1332 = vst [vmem:[%s274 + $0x78] sm:$0xff] %v1076
        %1333 = vst [vmem:[%s274 + $0x80] sm:$0xff] %v1235
        %1334 = vst [vmem:[%s274 + $0x88] sm:$0xff] %v1237
        %1335 = vst [vmem:[%s274 + $0x90] sm:$0xff] %v919
        %1336 = vst [vmem:[%s274 + $0x98] sm:$0xff] %v921
        %1337 = vst [vmem:[%s274 + $0xa0] sm:$0xff] %v1080
        %1338 = vst [vmem:[%s274 + $0xa8] sm:$0xff] %v1082
        %1339 = vst [vmem:[%s274 + $0xb0] sm:$0xff] %v1241
        %1340 = vst [vmem:[%s274 + $0xb8] sm:$0xff] %v1243
        %1341 = vst [vmem:[%s274 + $0xc0] sm:$0xff] %v925
        %1342 = vst [vmem:[%s274 + $0xc8] sm:$0xff] %v927
        %1343 = vst [vmem:[%s274 + $0xd0] sm:$0xff] %v1086
        %1344 = vst [vmem:[%s274 + $0xd8] sm:$0xff] %v1088
        %1345 = vst [vmem:[%s274 + $0xe0] sm:$0xff] %v1247
        %1346 = vst [vmem:[%s274 + $0xe8] sm:$0xff] %v1249
        %1347 = vst [vmem:[%s274 + $0xf0] sm:$0xff] %v931
        %1348 = vst [vmem:[%s274 + $0xf8] sm:$0xff] %v933
        %1349 = vst [vmem:[%s274 + $0x100] sm:$0xff] %v1092
        %1350 = vst [vmem:[%s274 + $0x108] sm:$0xff] %v1094
        %1351 = vst [vmem:[%s274 + $0x110] sm:$0xff] %v1253
        %1352 = vst [vmem:[%s274 + $0x118] sm:$0xff] %v1255
        %1353 = vst [vmem:[%s274 + $0x120] sm:$0xff] %v937
        %1354 = vst [vmem:[%s274 + $0x128] sm:$0xff] %v939
        %1355 = vst [vmem:[%s274 + $0x130] sm:$0xff] %v1098
        %1356 = vst [vmem:[%s274 + $0x138] sm:$0xff] %v1100
        %1357 = vst [vmem:[%s274 + $0x140] sm:$0xff] %v1259
        %1358 = vst [vmem:[%s274 + $0x148] sm:$0xff] %v1261
        %1359 = vst [vmem:[%s274 + $0x150] sm:$0xff] %v943
        %1360 = vst [vmem:[%s274 + $0x158] sm:$0xff] %v945
        %1361 = vst [vmem:[%s274 + $0x160] sm:$0xff] %v1104
        %1362 = vst [vmem:[%s274 + $0x168] sm:$0xff] %v1106
        %1363 = vst [vmem:[%s274 + $0x170] sm:$0xff] %v1265
        %1364 = vst [vmem:[%s274 + $0x178] sm:$0xff] %v1267
        %1365 = vst [vmem:[%s274 + $0x180] sm:$0xff] %v949
        %1366 = vst [vmem:[%s274 + $0x188] sm:$0xff] %v951
        %1367 = vst [vmem:[%s274 + $0x190] sm:$0xff] %v1110
        %1368 = vst [vmem:[%s274 + $0x198] sm:$0xff] %v1112
        %1369 = vst [vmem:[%s274 + $0x1a0] sm:$0xff] %v1271
        %1370 = vst [vmem:[%s274 + $0x1a8] sm:$0xff] %v1273
        %1371 = vst [vmem:[%s274 + $0x1b0] sm:$0xff] %v955
        %1372 = vst [vmem:[%s274 + $0x1b8] sm:$0xff] %v957
        %1373 = vst [vmem:[%s274 + $0x1c0] sm:$0xff] %v1116
        %1374 = vst [vmem:[%s274 + $0x1c8] sm:$0xff] %v1118
        %1375 = vst [vmem:[%s274 + $0x1d0] sm:$0xff] %v1277
        %1376 = vst [vmem:[%s274 + $0x1d8] sm:$0xff] %v1279
        %1377 = vst [vmem:[%s274 + $0x1e0] sm:$0xff] %v961
        %1378 = vst [vmem:[%s274 + $0x1e8] sm:$0xff] %v963
        %1379 = vst [vmem:[%s274 + $0x1f0] sm:$0xff] %v1122
        %1380 = vst [vmem:[%s274 + $0x1f8] sm:$0xff] %v1124
        %1381 = vst [vmem:[%s274 + $0x200] sm:$0xff] %v1283
        %1382 = vst [vmem:[%s274 + $0x208] sm:$0xff] %v1285
        %1383 = vst [vmem:[%s274 + $0x210] sm:$0xff] %v967
        %1384 = vst [vmem:[%s274 + $0x218] sm:$0xff] %v969
        %1385 = vst [vmem:[%s274 + $0x220] sm:$0xff] %v1128
        %1386 = vst [vmem:[%s274 + $0x228] sm:$0xff] %v1130
        %1387 = vst [vmem:[%s274 + $0x230] sm:$0xff] %v1289
        %1388 = vst [vmem:[%s274 + $0x238] sm:$0xff] %v1291
        %1389 = vst [vmem:[%s274 + $0x240] sm:$0xff] %v973
        %1390 = vst [vmem:[%s274 + $0x248] sm:$0xff] %v975
        %1391 = vst [vmem:[%s274 + $0x250] sm:$0xff] %v1134
        %1392 = vst [vmem:[%s274 + $0x258] sm:$0xff] %v1136
        %1393 = vst [vmem:[%s274 + $0x260] sm:$0xff] %v1295
        %1394 = vst [vmem:[%s274 + $0x268] sm:$0xff] %v1297
        %1395 = vst [vmem:[%s274 + $0x270] sm:$0xff] %v979
        %1396 = vst [vmem:[%s274 + $0x278] sm:$0xff] %v981
        %1397 = vst [vmem:[%s274 + $0x280] sm:$0xff] %v1140
        %1398 = vst [vmem:[%s274 + $0x288] sm:$0xff] %v1142
        %1399 = vst [vmem:[%s274 + $0x290] sm:$0xff] %v1301
        %1400 = vst [vmem:[%s274 + $0x298] sm:$0xff] %v1303
        %1401 = vst [vmem:[%s274 + $0x2a0] sm:$0xff] %v985
        %1402 = vst [vmem:[%s274 + $0x2a8] sm:$0xff] %v987
        %1403 = vst [vmem:[%s274 + $0x2b0] sm:$0xff] %v1146
        %1404 = vst [vmem:[%s274 + $0x2b8] sm:$0xff] %v1148
        %1405 = vst [vmem:[%s274 + $0x2c0] sm:$0xff] %v1307
        %1406 = vst [vmem:[%s274 + $0x2c8] sm:$0xff] %v1309
        %1407 = vst [vmem:[%s274 + $0x2d0] sm:$0xff] %v991
        %1408 = vst [vmem:[%s274 + $0x2d8] sm:$0xff] %v993
        %1409 = vst [vmem:[%s274 + $0x2e0] sm:$0xff] %v1152
        %1410 = vst [vmem:[%s274 + $0x2e8] sm:$0xff] %v1154
        %1411 = vst [vmem:[%s274 + $0x2f0] sm:$0xff] %v1313
        %1412 = vst [vmem:[%s274 + $0x2f8] sm:$0xff] %v1315
        %s1413 = sand.u32 %s136, 1
        %s1414 = scalar_lea.sflag [#allocation4], %s1413
        %s1415 = sand.u32 %s136, 1
        %s1416 = smul.addr %s1415, 768
        %s1417 = scalar_lea.vmem [#allocation10], %s1416
        // Predicated region
        $region53: #{tpu_custom_call.1} parent=35 // pred_check
          %p1418 = pneg %p146
        $region54: #{tpu_custom_call.1} parent=35 // pred_check_branch
          %1420 = sbr.rel (%p1418) target = $region56
        $region55: #{tpu_custom_call.1} parent=35 // pred_region
          %s1421 = smul.u32 16, %s28
          %s1423 = ssub.s32 12288, 12288
          %1424 = vsyncadd %s1414, %s1423
          %s1425 = smul.addr %s1421, 6
          %s1426 = smul.addr %s27, 192
          %s1427 = sadd.s32 %s1425, %s1426
          %s1428 = smul.addr %s1427, 128
          %s1429 = scalar_lea.hbm %s4, %s1428
          %s1430 = sshll.u32 %s1417, 4
          %s1431 = int_to_ptr.vmem [resolvable:$true] %s1430
          %1436 = dma.vmem_to_hbm [thread:$0]  %s1431, 12288, %s1429, %s1414, 768, 768, 48
        $region56: #{tpu_custom_call.1} parent=35 // pred_fallthru
          _
      $region36: #{tpu_custom_call.1} parent=5 // pred_fallthru
        _
      %p1437 = scmp.le.s32.totalorder 2, %s18
      // Predicated region
      $region57: #{tpu_custom_call.1} parent=5 // pred_check
        %p1438 = pneg %p1437
      $region58: #{tpu_custom_call.1} parent=5 // pred_check_branch
        %1440 = sbr.rel (%p1438) target = $region60
      $region59: #{tpu_custom_call.1} parent=5 // pred_region
        %s1441 = ssub.s32 %s18, 2
        // Predicated region
        $region61: #{tpu_custom_call.1} parent=59 // pred_check
          %p1442 = pneg %p152
        $region62: #{tpu_custom_call.1} parent=59 // pred_check_branch
          %1444 = sbr.rel (%p1442) target = $region64
        $region63: #{tpu_custom_call.1} parent=59 // pred_region
          %s1445 = sand.u32 %s137, 1
          %s1446 = scalar_lea.sflag [#allocation4], %s1445
          %s1447 = sand.u32 %s137, 1
          %s1448 = smul.addr %s1447, 768
          %s1449 = scalar_lea.vmem [#allocation10], %s1448
          %1450 = dma.done %s1446, 12288
        $region64: #{tpu_custom_call.1} parent=59 // pred_fallthru
          _
      $region60: #{tpu_custom_call.1} parent=5 // pred_fallthru
        _
    $region6: #{tpu_custom_call.1} parent=1 // loop_footer
      %s22 = sadd.s32 1, %s18
    $region7: #{tpu_custom_call.1} parent=1 // loop_footer_branch
      %17 = sbr.rel target = $region3
    $region8: #{tpu_custom_call.1} parent=1 // loop_exit
      _
    %1451 = vsyncpa [#allocation3], 1
    %s1452 = scalar_lea.sflag [#allocation3], 1
    %1453 = vsyncpa %s1452, 1
    %1454 = vsyncpa [#allocation6], 1
    %1455 = vsyncpa [#allocation9], 1
    %1456 = vsyncpa [#allocation4], 1
    %s1457 = scalar_lea.sflag [#allocation4], 1
    %1458 = vsyncpa %s1457, 1

</llo_original>
